<compile_context>
chip_gen: v7x
topology: tpu7x:2x2x1
jax: 0.10.0
libtpu: 0.0.40
codegen_flags: <defaults>
</compile_context>

<pallas_src>
import functools

import jax
import jax.numpy as jnp
from jax import lax
from jax.experimental import pallas as pl
from jax.experimental.pallas import tpu as pltpu

# Synthesized "VGG" sizes.
CIN = 3
C1 = 8
C2 = 8

CPACK = 8                 # channels packed per x position in the lane dim
XPACK = 16                # x positions packed in the lane dim
LANES = XPACK * CPACK     # = 128


def _round_up(a, b):
    return (a + b - 1) // b * b


# ------------------------------ fused kernel --------------------------------------
def _fused_vgg_mse_kernel(x_ref, w1_ref, b1_ref, w2_ref, b2_ref, o_ref, h1_ref,
                          *, H, rpi):
    """One grid step = one (output, target) pair, entirely in VMEM.

    Row layout (per pair): 8 zero rows | image0 block (rpi rows) | image1 block (rpi
    rows) | 8 zero rows.  Inside an image block: row 0 = top halo (0), rows 1..H =
    image rows, row H+1 = bottom halo (0), remaining rows zero pad to a multiple of 8.
    Lane layout: lane = x*CPACK + c.

    x_ref  : (1, R, 128) f32   packed, padded input rows for both images
    w1_ref : (3, 128, 128) bf16  per-dy block-banded layer-1 weights
    b1_ref : (1, 128) f32
    w2_ref : (3, 128, 128) bf16
    b2_ref : (1, 128) f32
    o_ref  : (1, 8, 128) f32   lane-dense per-pair partial sum of squared diffs
    h1_ref : (R, 128) f32 VMEM scratch for the padded layer-1 features
    """
    M = 2 * rpi          # rows computed per pair (both images)
    R = M + 16

    # ---- layer 1: conv3x3 + ReLU as 3 row-shifted full-lane MXU matmuls ----------
    s = jnp.zeros((M, LANES), jnp.float32)
    for dy in range(3):
        xin = x_ref[0, 7 + dy:7 + dy + M, :].astype(jnp.bfloat16)
        s = s + jnp.dot(xin, w1_ref[dy], preferred_element_type=jnp.float32)
    h1 = jnp.maximum(s + b1_ref[...], 0.0)

    # Zero the halo / pad rows so they act as conv zero-padding for layer 2.
    p = lax.broadcasted_iota(jnp.int32, (M, LANES), 0) % rpi
    valid = (p >= 1) & (p <= H)
    h1 = jnp.where(valid, h1, 0.0)

    # Stage into scratch; only the two 8-row halo strips are zero-filled (aligned).
    h1_ref[0:8, :] = jnp.zeros((8, LANES), jnp.float32)
    h1_ref[M + 8:R, :] = jnp.zeros((8, LANES), jnp.float32)
    h1_ref[8:8 + M, :] = h1

    # ---- layer 2: same structure, full 128 real K-lanes --------------------------
    s2 = jnp.zeros((M, LANES), jnp.float32)
    for dy in range(3):
        t = h1_ref[7 + dy:7 + dy + M, :].astype(jnp.bfloat16)
        s2 = s2 + jnp.dot(t, w2_ref[dy], preferred_element_type=jnp.float32)
    h2 = jnp.maximum(s2 + b2_ref[...], 0.0)
    h2 = jnp.where(valid, h2, 0.0)          # invalid rows differ per image -> mask

    # ---- squared-error partial: output-image rows vs target-image rows -----------
    d = h2[0:rpi, :] - h2[rpi:M, :]          # halo/pad rows are 0 - 0
    dd = d * d
    acc = dd[0:8, :]
    for t in range(1, rpi // 8):
        acc = acc + dd[8 * t:8 * t + 8, :]
    o_ref[0] = acc                            # lane-dense (8,128) partial


# ------------------------------ parameter setup ------------------------------------
def init_vgg_params(key, cin=CIN, c1=C1, c2=C2):
    k1, k2, k3, k4 = jax.random.split(key, 4)
    w1 = jax.random.normal(k1, (3, 3, cin, c1), jnp.float32) * 0.1
    b1 = jax.random.normal(k2, (c1,), jnp.float32) * 0.01
    w2 = jax.random.normal(k3, (3, 3, c1, c2), jnp.float32) * 0.1
    b2 = jax.random.normal(k4, (c2,), jnp.float32) * 0.01
    return (w1, b1, w2, b2)


def _pack_conv_weight(w):
    """(3,3,cin,cout) HWIO -> (3, 128, 128) bf16 block-banded per-dy matrices.

    Entry [dy, x_in*8+c_in, x_out*8+c_out] = w[dy, x_in-x_out+1, c_in, c_out]
    (zero when |x_in-x_out| > 1 or channels are padding), so the dx shift and the
    x zero-padding are folded into the matmul.
    """
    ci, co = w.shape[2], w.shape[3]
    wp = jnp.zeros((3, 3, CPACK, CPACK), jnp.float32).at[:, :, :ci, :co].set(w)
    mats = []
    for dy in range(3):
        m = jnp.zeros((LANES, LANES), jnp.float32)
        for dx in range(3):
            e = jnp.eye(XPACK, k=1 - dx, dtype=jnp.float32)   # x_in = x_out + dx - 1
            m = m + jnp.kron(e, wp[dy, dx])
        mats.append(m)
    return jnp.stack(mats).astype(jnp.bfloat16)


def _pack_bias(b):
    bp = jnp.zeros((CPACK,), jnp.float32).at[:b.shape[0]].set(b)
    return jnp.tile(bp, XPACK).reshape(1, LANES)


def _pack_rows(x_nchw):
    """(B, C, H, W=16) NCHW -> (B, H, 128) rows with lane = x*8 + c (c >= C zero)."""
    B, C, H, W = x_nchw.shape
    x = jnp.transpose(x_nchw, (0, 2, 3, 1)).astype(jnp.float32)
    x = jnp.pad(x, ((0, 0), (0, 0), (0, 0), (0, CPACK - C)))
    return x.reshape(B, H, W * CPACK)


# ------------------------------ loss wrapper ---------------------------------------
@jax.jit
def terrain_consistent_loss(output_nchw, target_nchw, params):
    w1, b1, w2, b2 = params
    n, cin, H, W = output_nchw.shape
    assert W == XPACK and cin <= CPACK and w1.shape[3] <= CPACK and w2.shape[3] <= CPACK
    c2 = w2.shape[3]
    rpi = _round_up(H + 2, 8)        # padded rows per image inside the kernel
    R = 2 * rpi + 16

    w1_k = _pack_conv_weight(w1)
    w2_k = _pack_conv_weight(w2)
    b1_k = _pack_bias(b1)
    b2_k = _pack_bias(b2)

    # Per-pair padded row buffer: [8 zero | img_out block | img_tgt block | 8 zero].
    ro = _pack_rows(output_nchw)
    rt = _pack_rows(target_nchw)
    blk_o = jnp.pad(ro, ((0, 0), (1, rpi - H - 1), (0, 0)))
    blk_t = jnp.pad(rt, ((0, 0), (1, rpi - H - 1), (0, 0)))
    xbuf = jnp.pad(jnp.concatenate([blk_o, blk_t], axis=1),
                   ((0, 0), (8, 8), (0, 0)))                     # (n, R, 128)

    kernel = functools.partial(_fused_vgg_mse_kernel, H=H, rpi=rpi)
    partials = pl.pallas_call(
        kernel,
        out_shape=jax.ShapeDtypeStruct((n, 8, LANES), jnp.float32),
        grid_spec=pltpu.PrefetchScalarGridSpec(
            num_scalar_prefetch=0,
            grid=(n,),                    # one step per (output, target) pair
            in_specs=[
                pl.BlockSpec((1, R, LANES), lambda i: (i, 0, 0)),
                pl.BlockSpec((3, LANES, LANES), lambda i: (0, 0, 0)),
                pl.BlockSpec((1, LANES), lambda i: (0, 0)),
                pl.BlockSpec((3, LANES, LANES), lambda i: (0, 0, 0)),
                pl.BlockSpec((1, LANES), lambda i: (0, 0)),
            ],
            out_specs=pl.BlockSpec((1, 8, LANES), lambda i: (i, 0, 0)),
            scratch_shapes=[pltpu.VMEM((R, LANES), jnp.float32)],
        ),
        compiler_params=pltpu.CompilerParams(
            dimension_semantics=("parallel",)),   # v7x: pairs split across 2 TCs
    )(xbuf, w1_k, b1_k, w2_k, b2_k)

    # nn.MSELoss(): mean over all real feature elements (n, c2, H, W).
    return jnp.sum(partials) / (n * H * W * c2)


# ------------------------------ pure-JAX reference ---------------------------------
def _reference_loss(output, target, params):
    w1, b1, w2, b2 = params

    def vgg(x):
        y = lax.conv_general_dilated(x, w1, (1, 1), ((1, 1), (1, 1)),
                                     dimension_numbers=("NCHW", "HWIO", "NCHW"),
                                     precision=lax.Precision.HIGHEST)
        y = jax.nn.relu(y + b1[None, :, None, None])
        y = lax.conv_general_dilated(y, w2, (1, 1), ((1, 1), (1, 1)),
                                     dimension_numbers=("NCHW", "HWIO", "NCHW"),
                                     precision=lax.Precision.HIGHEST)
        return jax.nn.relu(y + b2[None, :, None, None])

    fo, ft = vgg(output), vgg(target)
    return jnp.mean((fo - ft) ** 2)


# ------------------------------------ main -----------------------------------------
if __name__ == "__main__":
    key = jax.random.PRNGKey(0)
    k_params, k_out, k_tgt = jax.random.split(key, 3)

    params = init_vgg_params(k_params)

    # NCHW inputs, matching the PyTorch module's convention.
    output = jax.random.normal(k_out, (2, CIN, 16, 16), jnp.float32)
    target = jax.random.normal(k_tgt, (2, CIN, 16, 16), jnp.float32)

    loss = terrain_consistent_loss(output, target, params)
    jax.block_until_ready(loss)

    ref = _reference_loss(output, target, params)
    assert bool(jnp.isfinite(loss)), loss
    # bf16 matmul operands -> allow a small relative tolerance vs the f32 reference.
    assert abs(float(loss) - float(ref)) <= 0.05 * abs(float(ref)) + 1e-3, (loss, ref)

    print("KERNEL_OK")
</pallas_src>

<mosaic_0001>
module attributes {stable_mosaic.version = 11 : i64} {
  func.func @_fused_vgg_mse_kernel(%arg0: i32, %arg1: memref<1x64x128xf32, #tpu.memory_space<vmem>>, %arg2: memref<3x128x128xbf16, #tpu.memory_space<vmem>>, %arg3: memref<1x128xf32, #tpu.memory_space<vmem>>, %arg4: memref<3x128x128xbf16, #tpu.memory_space<vmem>>, %arg5: memref<1x128xf32, #tpu.memory_space<vmem>>, %arg6: memref<1x8x128xf32, #tpu.memory_space<vmem>>, %arg7: memref<64x128xf32, #tpu.memory_space<vmem>>) attributes {dimension_semantics = [#tpu.dimension_semantics<parallel>], iteration_bounds = array<i64: 2>, scalar_prefetch = 0 : i64, scratch_operands = 1 : i64, tpu.core_type = #tpu.core_type<tc>, window_params = [{transform_indices = @transform_0, window_bounds = array<i64: 1, 64, 128>}, {pipeline_mode = #tpu.pipeline_mode<synchronous>, transform_indices = @transform_1, window_bounds = array<i64: 3, 128, 128>}, {pipeline_mode = #tpu.pipeline_mode<synchronous>, transform_indices = @transform_2, window_bounds = array<i64: 1, 128>}, {pipeline_mode = #tpu.pipeline_mode<synchronous>, transform_indices = @transform_3, window_bounds = array<i64: 3, 128, 128>}, {pipeline_mode = #tpu.pipeline_mode<synchronous>, transform_indices = @transform_4, window_bounds = array<i64: 1, 128>}, {transform_indices = @transform_5, window_bounds = array<i64: 1, 8, 128>}]} {
    %cst = arith.constant 0.000000e+00 : f32
    %0 = vector.broadcast %cst : f32 to vector<48x128xf32>
    %c0 = arith.constant 0 : index
    %c7 = arith.constant 7 : index
    %c0_0 = arith.constant 0 : index
    %1 = vector.load %arg1[%c0, %c7, %c0_0] : memref<1x64x128xf32, #tpu.memory_space<vmem>>, vector<1x48x128xf32>
    %2 = vector.shape_cast %1 : vector<1x48x128xf32> to vector<48x128xf32>
    %3 = arith.truncf %2 : vector<48x128xf32> to vector<48x128xbf16>
    %c0_1 = arith.constant 0 : index
    %c0_2 = arith.constant 0 : index
    %c0_3 = arith.constant 0 : index
    %4 = vector.load %arg2[%c0_1, %c0_2, %c0_3] : memref<3x128x128xbf16, #tpu.memory_space<vmem>>, vector<1x128x128xbf16>
    %5 = vector.shape_cast %4 : vector<1x128x128xbf16> to vector<128x128xbf16>
    %cst_4 = arith.constant dense<0.000000e+00> : vector<48x128xf32>
    %6 = tpu.matmul %3, %5, %cst_4 {dimension_numbers = #tpu.dot_dimension_numbers<[1], [0], [0], [1], [0, 0, 1, 1], [], []>} : vector<48x128xbf16>, vector<128x128xbf16>, vector<48x128xf32> -> vector<48x128xf32>
    %7 = arith.addf %0, %6 : vector<48x128xf32>
    %c0_5 = arith.constant 0 : index
    %c8 = arith.constant 8 : index
    %c0_6 = arith.constant 0 : index
    %8 = vector.load %arg1[%c0_5, %c8, %c0_6] : memref<1x64x128xf32, #tpu.memory_space<vmem>>, vector<1x48x128xf32>
    %9 = vector.shape_cast %8 : vector<1x48x128xf32> to vector<48x128xf32>
    %10 = arith.truncf %9 : vector<48x128xf32> to vector<48x128xbf16>
    %c1 = arith.constant 1 : index
    %c0_7 = arith.constant 0 : index
    %c0_8 = arith.constant 0 : index
    %11 = vector.load %arg2[%c1, %c0_7, %c0_8] : memref<3x128x128xbf16, #tpu.memory_space<vmem>>, vector<1x128x128xbf16>
    %12 = vector.shape_cast %11 : vector<1x128x128xbf16> to vector<128x128xbf16>
    %cst_9 = arith.constant dense<0.000000e+00> : vector<48x128xf32>
    %13 = tpu.matmul %10, %12, %cst_9 {dimension_numbers = #tpu.dot_dimension_numbers<[1], [0], [0], [1], [0, 0, 1, 1], [], []>} : vector<48x128xbf16>, vector<128x128xbf16>, vector<48x128xf32> -> vector<48x128xf32>
    %14 = arith.addf %7, %13 : vector<48x128xf32>
    %c0_10 = arith.constant 0 : index
    %c9 = arith.constant 9 : index
    %c0_11 = arith.constant 0 : index
    %15 = vector.load %arg1[%c0_10, %c9, %c0_11] : memref<1x64x128xf32, #tpu.memory_space<vmem>>, vector<1x48x128xf32>
    %16 = vector.shape_cast %15 : vector<1x48x128xf32> to vector<48x128xf32>
    %17 = arith.truncf %16 : vector<48x128xf32> to vector<48x128xbf16>
    %c2 = arith.constant 2 : index
    %c0_12 = arith.constant 0 : index
    %c0_13 = arith.constant 0 : index
    %18 = vector.load %arg2[%c2, %c0_12, %c0_13] : memref<3x128x128xbf16, #tpu.memory_space<vmem>>, vector<1x128x128xbf16>
    %19 = vector.shape_cast %18 : vector<1x128x128xbf16> to vector<128x128xbf16>
    %cst_14 = arith.constant dense<0.000000e+00> : vector<48x128xf32>
    %20 = tpu.matmul %17, %19, %cst_14 {dimension_numbers = #tpu.dot_dimension_numbers<[1], [0], [0], [1], [0, 0, 1, 1], [], []>} : vector<48x128xbf16>, vector<128x128xbf16>, vector<48x128xf32> -> vector<48x128xf32>
    %21 = arith.addf %14, %20 : vector<48x128xf32>
    %c0_15 = arith.constant 0 : index
    %c0_16 = arith.constant 0 : index
    %22 = vector.load %arg3[%c0_15, %c0_16] : memref<1x128xf32, #tpu.memory_space<vmem>>, vector<1x128xf32>
    %23 = vector.broadcast %22 : vector<1x128xf32> to vector<48x128xf32>
    %24 = arith.addf %21, %23 : vector<48x128xf32>
    %cst_17 = arith.constant 0.000000e+00 : f32
    %25 = vector.broadcast %cst_17 : f32 to vector<48x128xf32>
    %26 = arith.maximumf %24, %25 : vector<48x128xf32>
    %27 = tpu.iota {dimensions = array<i32: 0>} : vector<48x128xi32>
    %c24_i32 = arith.constant 24 : i32
    %c0_i32 = arith.constant 0 : i32
    %28 = arith.cmpi eq, %c24_i32, %c0_i32 : i32
    %c1_i32 = arith.constant 1 : i32
    %29 = arith.select %28, %c1_i32, %c24_i32 : i32
    %30 = vector.broadcast %29 : i32 to vector<48x128xi32>
    %31 = arith.remsi %27, %30 : vector<48x128xi32>
    %c0_i32_18 = arith.constant 0 : i32
    %32 = vector.broadcast %c0_i32_18 : i32 to vector<48x128xi32>
    %33 = arith.cmpi ne, %31, %32 : vector<48x128xi32>
    %c0_i32_19 = arith.constant 0 : i32
    %34 = vector.broadcast %c0_i32_19 : i32 to vector<48x128xi32>
    %35 = arith.cmpi slt, %31, %34 : vector<48x128xi32>
    %c0_i32_20 = arith.constant 0 : i32
    %36 = arith.cmpi slt, %29, %c0_i32_20 : i32
    %37 = vector.broadcast %36 : i1 to vector<48x128xi1>
    %38 = vector.broadcast %37 : vector<48x128xi1> to vector<48x128xi1>
    %39 = arith.xori %35, %38 : vector<48x128xi1>
    %40 = arith.andi %39, %33 : vector<48x128xi1>
    %41 = vector.broadcast %29 : i32 to vector<48x128xi32>
    %42 = arith.addi %31, %41 : vector<48x128xi32>
    %43 = arith.select %40, %42, %31 : vector<48x128xi1>, vector<48x128xi32>
    %c1_i32_21 = arith.constant 1 : i32
    %44 = vector.broadcast %c1_i32_21 : i32 to vector<48x128xi32>
    %45 = arith.cmpi sge, %43, %44 : vector<48x128xi32>
    %c16_i32 = arith.constant 16 : i32
    %46 = vector.broadcast %c16_i32 : i32 to vector<48x128xi32>
    %47 = arith.cmpi sle, %43, %46 : vector<48x128xi32>
    %48 = arith.andi %45, %47 : vector<48x128xi1>
    %cst_22 = arith.constant 0.000000e+00 : f32
    %49 = vector.broadcast %cst_22 : f32 to vector<48x128xf32>
    %50 = arith.select %48, %26, %49 : vector<48x128xi1>, vector<48x128xf32>
    %cst_23 = arith.constant 0.000000e+00 : f32
    %51 = vector.broadcast %cst_23 : f32 to vector<8x128xf32>
    %c0_24 = arith.constant 0 : index
    %c0_25 = arith.constant 0 : index
    %52 = vector.load %arg7[%c0_24, %c0_25] : memref<64x128xf32, #tpu.memory_space<vmem>>, vector<8x128xf32>
    tpu.vector_store %arg7[%c0_24, %c0_25], %51 {strides = array<i32>} : memref<64x128xf32, #tpu.memory_space<vmem>>, vector<8x128xf32>,
    %cst_26 = arith.constant 0.000000e+00 : f32
    %53 = vector.broadcast %cst_26 : f32 to vector<8x128xf32>
    %c56 = arith.constant 56 : index
    %c0_27 = arith.constant 0 : index
    %54 = vector.load %arg7[%c56, %c0_27] : memref<64x128xf32, #tpu.memory_space<vmem>>, vector<8x128xf32>
    tpu.vector_store %arg7[%c56, %c0_27], %53 {strides = array<i32>} : memref<64x128xf32, #tpu.memory_space<vmem>>, vector<8x128xf32>,
    %c8_28 = arith.constant 8 : index
    %c0_29 = arith.constant 0 : index
    %55 = vector.load %arg7[%c8_28, %c0_29] : memref<64x128xf32, #tpu.memory_space<vmem>>, vector<48x128xf32>
    tpu.vector_store %arg7[%c8_28, %c0_29], %50 {strides = array<i32>} : memref<64x128xf32, #tpu.memory_space<vmem>>, vector<48x128xf32>,
    %cst_30 = arith.constant 0.000000e+00 : f32
    %56 = vector.broadcast %cst_30 : f32 to vector<48x128xf32>
    %c7_31 = arith.constant 7 : index
    %c0_32 = arith.constant 0 : index
    %57 = vector.load %arg7[%c7_31, %c0_32] : memref<64x128xf32, #tpu.memory_space<vmem>>, vector<48x128xf32>
    %58 = arith.truncf %57 : vector<48x128xf32> to vector<48x128xbf16>
    %c0_33 = arith.constant 0 : index
    %c0_34 = arith.constant 0 : index
    %c0_35 = arith.constant 0 : index
    %59 = vector.load %arg4[%c0_33, %c0_34, %c0_35] : memref<3x128x128xbf16, #tpu.memory_space<vmem>>, vector<1x128x128xbf16>
    %60 = vector.shape_cast %59 : vector<1x128x128xbf16> to vector<128x128xbf16>
    %cst_36 = arith.constant dense<0.000000e+00> : vector<48x128xf32>
    %61 = tpu.matmul %58, %60, %cst_36 {dimension_numbers = #tpu.dot_dimension_numbers<[1], [0], [0], [1], [0, 0, 1, 1], [], []>} : vector<48x128xbf16>, vector<128x128xbf16>, vector<48x128xf32> -> vector<48x128xf32>
    %62 = arith.addf %56, %61 : vector<48x128xf32>
    %c8_37 = arith.constant 8 : index
    %c0_38 = arith.constant 0 : index
    %63 = vector.load %arg7[%c8_37, %c0_38] : memref<64x128xf32, #tpu.memory_space<vmem>>, vector<48x128xf32>
    %64 = arith.truncf %63 : vector<48x128xf32> to vector<48x128xbf16>
    %c1_39 = arith.constant 1 : index
    %c0_40 = arith.constant 0 : index
    %c0_41 = arith.constant 0 : index
    %65 = vector.load %arg4[%c1_39, %c0_40, %c0_41] : memref<3x128x128xbf16, #tpu.memory_space<vmem>>, vector<1x128x128xbf16>
    %66 = vector.shape_cast %65 : vector<1x128x128xbf16> to vector<128x128xbf16>
    %cst_42 = arith.constant dense<0.000000e+00> : vector<48x128xf32>
    %67 = tpu.matmul %64, %66, %cst_42 {dimension_numbers = #tpu.dot_dimension_numbers<[1], [0], [0], [1], [0, 0, 1, 1], [], []>} : vector<48x128xbf16>, vector<128x128xbf16>, vector<48x128xf32> -> vector<48x128xf32>
    %68 = arith.addf %62, %67 : vector<48x128xf32>
    %c9_43 = arith.constant 9 : index
    %c0_44 = arith.constant 0 : index
    %69 = vector.load %arg7[%c9_43, %c0_44] : memref<64x128xf32, #tpu.memory_space<vmem>>, vector<48x128xf32>
    %70 = arith.truncf %69 : vector<48x128xf32> to vector<48x128xbf16>
    %c2_45 = arith.constant 2 : index
    %c0_46 = arith.constant 0 : index
    %c0_47 = arith.constant 0 : index
    %71 = vector.load %arg4[%c2_45, %c0_46, %c0_47] : memref<3x128x128xbf16, #tpu.memory_space<vmem>>, vector<1x128x128xbf16>
    %72 = vector.shape_cast %71 : vector<1x128x128xbf16> to vector<128x128xbf16>
    %cst_48 = arith.constant dense<0.000000e+00> : vector<48x128xf32>
    %73 = tpu.matmul %70, %72, %cst_48 {dimension_numbers = #tpu.dot_dimension_numbers<[1], [0], [0], [1], [0, 0, 1, 1], [], []>} : vector<48x128xbf16>, vector<128x128xbf16>, vector<48x128xf32> -> vector<48x128xf32>
    %74 = arith.addf %68, %73 : vector<48x128xf32>
    %c0_49 = arith.constant 0 : index
    %c0_50 = arith.constant 0 : index
    %75 = vector.load %arg5[%c0_49, %c0_50] : memref<1x128xf32, #tpu.memory_space<vmem>>, vector<1x128xf32>
    %76 = vector.broadcast %75 : vector<1x128xf32> to vector<48x128xf32>
    %77 = arith.addf %74, %76 : vector<48x128xf32>
    %cst_51 = arith.constant 0.000000e+00 : f32
    %78 = vector.broadcast %cst_51 : f32 to vector<48x128xf32>
    %79 = arith.maximumf %77, %78 : vector<48x128xf32>
    %cst_52 = arith.constant 0.000000e+00 : f32
    %80 = vector.broadcast %cst_52 : f32 to vector<48x128xf32>
    %81 = arith.select %48, %79, %80 : vector<48x128xi1>, vector<48x128xf32>
    %82 = vector.extract_strided_slice %81 {offsets = [0, 0], sizes = [24, 128], strides = [1, 1]} : vector<48x128xf32> to vector<24x128xf32>
    %83 = vector.extract_strided_slice %81 {offsets = [24, 0], sizes = [24, 128], strides = [1, 1]} : vector<48x128xf32> to vector<24x128xf32>
    %84 = arith.subf %82, %83 : vector<24x128xf32>
    %85 = arith.mulf %84, %84 : vector<24x128xf32>
    %86 = vector.extract_strided_slice %85 {offsets = [0, 0], sizes = [8, 128], strides = [1, 1]} : vector<24x128xf32> to vector<8x128xf32>
    %87 = vector.extract_strided_slice %85 {offsets = [8, 0], sizes = [8, 128], strides = [1, 1]} : vector<24x128xf32> to vector<8x128xf32>
    %88 = arith.addf %86, %87 : vector<8x128xf32>
    %89 = vector.extract_strided_slice %85 {offsets = [16, 0], sizes = [8, 128], strides = [1, 1]} : vector<24x128xf32> to vector<8x128xf32>
    %90 = arith.addf %88, %89 : vector<8x128xf32>
    %c0_53 = arith.constant 0 : index
    %c0_54 = arith.constant 0 : index
    %c0_55 = arith.constant 0 : index
    %91 = vector.load %arg6[%c0_53, %c0_54, %c0_55] : memref<1x8x128xf32, #tpu.memory_space<vmem>>, vector<1x8x128xf32>
    %92 = vector.shape_cast %91 : vector<1x8x128xf32> to vector<8x128xf32>
    %93 = vector.shape_cast %90 : vector<8x128xf32> to vector<1x8x128xf32>
    tpu.vector_store %arg6[%c0_53, %c0_54, %c0_55], %93 {strides = array<i32>} : memref<1x8x128xf32, #tpu.memory_space<vmem>>, vector<1x8x128xf32>,
    return
  }
  func.func @transform_0(%arg0: i32) -> (i32, i32, i32) {
    %c0_i32 = arith.constant 0 : i32
    %c0_i32_0 = arith.constant 0 : i32
    %c0_i32_1 = arith.constant 0 : i32
    return %arg0, %c0_i32, %c0_i32_0 : i32, i32, i32
  }
  func.func @transform_1(%arg0: i32) -> (i32, i32, i32) {
    %c0_i32 = arith.constant 0 : i32
    %c0_i32_0 = arith.constant 0 : i32
    %c0_i32_1 = arith.constant 0 : i32
    %c0_i32_2 = arith.constant 0 : i32
    return %c0_i32, %c0_i32_0, %c0_i32_1 : i32, i32, i32
  }
  func.func @transform_2(%arg0: i32) -> (i32, i32) {
    %c0_i32 = arith.constant 0 : i32
    %c0_i32_0 = arith.constant 0 : i32
    %c0_i32_1 = arith.constant 0 : i32
    return %c0_i32, %c0_i32_0 : i32, i32
  }
  func.func @transform_3(%arg0: i32) -> (i32, i32, i32) {
    %c0_i32 = arith.constant 0 : i32
    %c0_i32_0 = arith.constant 0 : i32
    %c0_i32_1 = arith.constant 0 : i32
    %c0_i32_2 = arith.constant 0 : i32
    return %c0_i32, %c0_i32_0, %c0_i32_1 : i32, i32, i32
  }
  func.func @transform_4(%arg0: i32) -> (i32, i32) {
    %c0_i32 = arith.constant 0 : i32
    %c0_i32_0 = arith.constant 0 : i32
    %c0_i32_1 = arith.constant 0 : i32
    return %c0_i32, %c0_i32_0 : i32, i32
  }
  func.func @transform_5(%arg0: i32) -> (i32, i32, i32) {
    %c0_i32 = arith.constant 0 : i32
    %c0_i32_0 = arith.constant 0 : i32
    %c0_i32_1 = arith.constant 0 : i32
    return %arg0, %c0_i32, %c0_i32_0 : i32, i32, i32
  }
}

</mosaic_0001>

<llo_original>
// kernel: tile.13
$region0: #{tile.13}
  #allocation0 [shape = 's32[1]{0}', space=sflag, size = 0x4, scoped, tag = 'scoped memory for tile.13']
  %s0 = inlined_call_operand.vmem [shape: f32[8], index: 0, kind: input, shape index: {}]
  %s1 = inlined_call_operand.vmem [shape: f32[16,8], index: 1, kind: output, shape index: {}]
  // Predicated region
  $region2: #{tile.13} parent=0 // pred_check
    _
  $region3: #{tile.13} parent=0 // pred_check_branch
    %3 = sbr.rel (0) target = $region5
  $region4: #{tile.13} parent=0 // pred_region
    _
  $region5: #{tile.13} parent=0 // pred_fallthru
    _
  %v4 = vld [vmem:[%s0] ss:$0 sm:$0xff]
  %5 = vst [vmem:[%s1] sm:$0xff] %v4
  %s6 = scalar_lea.vmem %s1, 8
  %7 = vst [vmem:[%s6] sm:$0xff] %v4

// kernel: tile.14
$region0: #{tile.14}
  %s0 = inlined_call_operand.vmem [shape: f32[16,8], index: 0, kind: input, shape index: {}]
  %s1 = inlined_call_operand.vmem [shape: f32[1,128], index: 1, kind: output, shape index: {}]
  $region1: #{tile.14} parent=0
    #allocation0 [shape = 'u8[4096]{0}', space=vmem, size = 0x1000, scoped, tag = 'scoped mem for output reshape']
    %v2 = vld [vmem:[%s0] sm:$0x1]
    %vm3 = vcmask 64512
    %4 = vst.msk [vmem:[#allocation0] sm:$0x1] %vm3, %v2
    %s5 = scalar_lea.vmem %s0, 15
    %v6 = vld [vmem:[%s5] sm:$0x1]
    %7 = vrot.lane.b32.xlu0 %v6, 120
    %v8 = vpop.permute.xlu0 %7
    %vm9 = vcmask 1048512
    %10 = vst.msk [vmem:[#allocation0] sm:$0x1] %vm9, %v8
    %s11 = scalar_lea.vmem %s0, 14
    %v12 = vld [vmem:[%s11] sm:$0x1]
    %13 = vrot.lane.b32.xlu0 %v12, 112
    %v14 = vpop.permute.xlu0 %13
    %vm15 = vcmask 982912
    %16 = vst.msk [vmem:[#allocation0] sm:$0x1] %vm15, %v14
    %s17 = scalar_lea.vmem %s0, 13
    %v18 = vld [vmem:[%s17] sm:$0x1]
    %19 = vrot.lane.b32.xlu0 %v18, 104
    %v20 = vpop.permute.xlu0 %19
    %vm21 = vcmask 917312
    %22 = vst.msk [vmem:[#allocation0] sm:$0x1] %vm21, %v20
    %s23 = scalar_lea.vmem %s0, 12
    %v24 = vld [vmem:[%s23] sm:$0x1]
    %25 = vrot.lane.b32.xlu0 %v24, 96
    %v26 = vpop.permute.xlu0 %25
    %vm27 = vcmask 851712
    %28 = vst.msk [vmem:[#allocation0] sm:$0x1] %vm27, %v26
    %s29 = scalar_lea.vmem %s0, 11
    %v30 = vld [vmem:[%s29] sm:$0x1]
    %31 = vrot.lane.b32.xlu0 %v30, 88
    %v32 = vpop.permute.xlu0 %31
    %vm33 = vcmask 786112
    %34 = vst.msk [vmem:[#allocation0] sm:$0x1] %vm33, %v32
    %s35 = scalar_lea.vmem %s0, 10
    %v36 = vld [vmem:[%s35] sm:$0x1]
    %37 = vrot.lane.b32.xlu0 %v36, 80
    %v38 = vpop.permute.xlu0 %37
    %vm39 = vcmask 720512
    %40 = vst.msk [vmem:[#allocation0] sm:$0x1] %vm39, %v38
    %s41 = scalar_lea.vmem %s0, 9
    %v42 = vld [vmem:[%s41] sm:$0x1]
    %43 = vrot.lane.b32.xlu0 %v42, 72
    %v44 = vpop.permute.xlu0 %43
    %vm45 = vcmask 654912
    %46 = vst.msk [vmem:[#allocation0] sm:$0x1] %vm45, %v44
    %s47 = scalar_lea.vmem %s0, 8
    %v48 = vld [vmem:[%s47] sm:$0x1]
    %49 = vrot.lane.b32.xlu0 %v48, 64
    %v50 = vpop.permute.xlu0 %49
    %vm51 = vcmask 589312
    %52 = vst.msk [vmem:[#allocation0] sm:$0x1] %vm51, %v50
    %s53 = scalar_lea.vmem %s0, 7
    %v54 = vld [vmem:[%s53] sm:$0x1]
    %55 = vrot.lane.b32.xlu0 %v54, 56
    %v56 = vpop.permute.xlu0 %55
    %vm57 = vcmask 523712
    %58 = vst.msk [vmem:[#allocation0] sm:$0x1] %vm57, %v56
    %s59 = scalar_lea.vmem %s0, 6
    %v60 = vld [vmem:[%s59] sm:$0x1]
    %61 = vrot.lane.b32.xlu0 %v60, 48
    %v62 = vpop.permute.xlu0 %61
    %vm63 = vcmask 458112
    %64 = vst.msk [vmem:[#allocation0] sm:$0x1] %vm63, %v62
    %s65 = scalar_lea.vmem %s0, 5
    %v66 = vld [vmem:[%s65] sm:$0x1]
    %67 = vrot.lane.b32.xlu0 %v66, 40
    %v68 = vpop.permute.xlu0 %67
    %vm69 = vcmask 392512
    %70 = vst.msk [vmem:[#allocation0] sm:$0x1] %vm69, %v68
    %s71 = scalar_lea.vmem %s0, 4
    %v72 = vld [vmem:[%s71] sm:$0x1]
    %73 = vrot.lane.b32.xlu0 %v72, 32
    %v74 = vpop.permute.xlu0 %73
    %vm75 = vcmask 326912
    %76 = vst.msk [vmem:[#allocation0] sm:$0x1] %vm75, %v74
    %s77 = scalar_lea.vmem %s0, 3
    %v78 = vld [vmem:[%s77] sm:$0x1]
    %79 = vrot.lane.b32.xlu0 %v78, 24
    %v80 = vpop.permute.xlu0 %79
    %vm81 = vcmask 261312
    %82 = vst.msk [vmem:[#allocation0] sm:$0x1] %vm81, %v80
    %s83 = scalar_lea.vmem %s0, 2
    %v84 = vld [vmem:[%s83] sm:$0x1]
    %85 = vrot.lane.b32.xlu0 %v84, 16
    %v86 = vpop.permute.xlu0 %85
    %vm87 = vcmask 195712
    %88 = vst.msk [vmem:[#allocation0] sm:$0x1] %vm87, %v86
    %s89 = scalar_lea.vmem %s0, 1
    %v90 = vld [vmem:[%s89] sm:$0x1]
    %91 = vrot.lane.b32.xlu0 %v90, 8
    %v92 = vpop.permute.xlu0 %91
    %vm93 = vcmask 130112
    %94 = vst.msk [vmem:[#allocation0] sm:$0x1] %vm93, %v92
    %s96 = sshllo.u32 0, 1
    %v98 = vld [vmem:[#allocation0] sm:%s96]
    %s99 = sshllo.u32 0, 1
    %100 = vst [vmem:[%s1] sm:%s99] %v98

// kernel: terrain_consistent_loss.1
$region0: #{terrain_consistent_loss.1}
  #allocation0 [shape = 'u32[]', space=smem, size = 0x4, offset = 0x4, fixed_abs, tag = 'smem constant byte address 0x4 - core index']
  #allocation1 [shape = 'u32[144,128]{1,0:T(1,128)}', space=vmem, size = 0x12000, scoped, tag = 'internal scratch']
  #allocation2 [shape = 'f32[64,128]{1,0:T(8,128)}', space=vmem, size = 0x8000, scoped, tag = 'scratch operand']
  %s0 = inlined_call_operand.vmem [shape: f32[2,64,128], index: 0, kind: input, shape index: {}]
  %s1 = inlined_call_operand.vmem [shape: bf16[3,128,128], index: 1, kind: input, shape index: {}]
  %s2 = inlined_call_operand.vmem [shape: f32[1,128], index: 2, kind: input, shape index: {}]
  %s3 = inlined_call_operand.vmem [shape: bf16[3,128,128], index: 3, kind: input, shape index: {}]
  %s4 = inlined_call_operand.vmem [shape: f32[1,128], index: 4, kind: input, shape index: {}]
  %s5 = inlined_call_operand.vmem [shape: f32[2,8,128], index: 5, kind: output, shape index: {}]
  %s6 = sld [smem:[#allocation0]]
  $region53: #{terrain_consistent_loss.1} parent=0
    _
  %s8 = ssub.s32 1, %s6
  %s9 = scalar_select 0, %s8, %s6
  loop: start=0, step=1, limit=4
  $region2: #{terrain_consistent_loss.1} parent=0 // loop_pre_header
    _
  $region3: #{terrain_consistent_loss.1} parent=0 // loop_header
    %s11 = sphi 0, %s15
    %p12 = scmp.ge.s32.totalorder %s11, 4
    %s21 = sphi 0, %s23
    %s24 = sphi 0, %s21
    %s25 = sphi 0, %s24
    %s41 = sphi 0, %s25
    %s45 = sphi 0, %s45
    %s47 = sphi 0, %s45
    %s48 = sphi 0, %s47
    %s62 = sphi 0, %s48
    %s66 = sphi 0, %s66
    %s68 = sphi 0, %s66
    %s69 = sphi 0, %s68
    %s83 = sphi 0, %s69
    %s87 = sphi 0, %s87
    %s89 = sphi 0, %s87
    %s90 = sphi 0, %s89
    %s104 = sphi 0, %s90
    %s108 = sphi 0, %s108
    %s110 = sphi 0, %s108
    %s111 = sphi 0, %s110
    %s125 = sphi 0, %s111
    %s131 = sphi 0, %s133
    %s134 = sphi 0, %s131
    %s135 = sphi 0, %s134
    %s151 = sphi 0, %s135
  $region4: #{terrain_consistent_loss.1} parent=0 // loop_header_branch
    %14 = sbr.rel (%p12) target = $region8
  $region5: #{terrain_consistent_loss.1} parent=0 // loop_body
    %s16 = ssub.s32 %s11, 1
    %s17 = ssub.s32 %s11, 2
    %s18 = sadd.s32 %s11, 1
    %s19 = ssub.s32 %s11, %s18
    %p20 = scmp.eq.s32.totalorder %s19, 0
    %s22 = sadd.s32 %s21, 1
    %s23 = scalar_select %p20, %s21, %s22
    %p26 = pneg %p20
    %p27 = scmp.eq.s32.totalorder %s11, 1
    %p28 = por %p26, %p27
    %p29 = scmp.ne.s32.totalorder %s21, %s24
    %p30 = scmp.eq.s32.totalorder %s11, 0
    %p31 = por %p29, %p30
    %p32 = scmp.ne.s32.totalorder %s21, %s24
    %p33 = scmp.eq.s32.totalorder %s16, 1
    %p34 = por %p32, %p33
    %p35 = scmp.ne.s32.totalorder %s24, %s25
    %p36 = scmp.eq.s32.totalorder %s16, 0
    %p37 = por %p35, %p36
    %p38 = scmp.ne.s32.totalorder %s24, %s25
    %p39 = scmp.eq.s32.totalorder %s17, 1
    %p40 = por %p38, %p39
    %p42 = scmp.ne.s32.totalorder %s25, %s41
    %p43 = scmp.eq.s32.totalorder %s17, 0
    %p44 = por %p42, %p43
    %s46 = sadd.s32 %s45, 1
    %p49 = scmp.eq.s32.totalorder %s11, 1
    %p50 = scmp.ne.s32.totalorder %s45, %s47
    %p51 = scmp.eq.s32.totalorder %s11, 0
    %p52 = por %p50, %p51
    %p53 = scmp.ne.s32.totalorder %s45, %s47
    %p54 = scmp.eq.s32.totalorder %s16, 1
    %p55 = por %p53, %p54
    %p56 = scmp.ne.s32.totalorder %s47, %s48
    %p57 = scmp.eq.s32.totalorder %s16, 0
    %p58 = por %p56, %p57
    %p59 = scmp.ne.s32.totalorder %s47, %s48
    %p60 = scmp.eq.s32.totalorder %s17, 1
    %p61 = por %p59, %p60
    %p63 = scmp.ne.s32.totalorder %s48, %s62
    %p64 = scmp.eq.s32.totalorder %s17, 0
    %p65 = por %p63, %p64
    %s67 = sadd.s32 %s66, 1
    %p70 = scmp.eq.s32.totalorder %s11, 1
    %p71 = scmp.ne.s32.totalorder %s66, %s68
    %p72 = scmp.eq.s32.totalorder %s11, 0
    %p73 = por %p71, %p72
    %p74 = scmp.ne.s32.totalorder %s66, %s68
    %p75 = scmp.eq.s32.totalorder %s16, 1
    %p76 = por %p74, %p75
    %p77 = scmp.ne.s32.totalorder %s68, %s69
    %p78 = scmp.eq.s32.totalorder %s16, 0
    %p79 = por %p77, %p78
    %p80 = scmp.ne.s32.totalorder %s68, %s69
    %p81 = scmp.eq.s32.totalorder %s17, 1
    %p82 = por %p80, %p81
    %p84 = scmp.ne.s32.totalorder %s69, %s83
    %p85 = scmp.eq.s32.totalorder %s17, 0
    %p86 = por %p84, %p85
    %s88 = sadd.s32 %s87, 1
    %p91 = scmp.eq.s32.totalorder %s11, 1
    %p92 = scmp.ne.s32.totalorder %s87, %s89
    %p93 = scmp.eq.s32.totalorder %s11, 0
    %p94 = por %p92, %p93
    %p95 = scmp.ne.s32.totalorder %s87, %s89
    %p96 = scmp.eq.s32.totalorder %s16, 1
    %p97 = por %p95, %p96
    %p98 = scmp.ne.s32.totalorder %s89, %s90
    %p99 = scmp.eq.s32.totalorder %s16, 0
    %p100 = por %p98, %p99
    %p101 = scmp.ne.s32.totalorder %s89, %s90
    %p102 = scmp.eq.s32.totalorder %s17, 1
    %p103 = por %p101, %p102
    %p105 = scmp.ne.s32.totalorder %s90, %s104
    %p106 = scmp.eq.s32.totalorder %s17, 0
    %p107 = por %p105, %p106
    %s109 = sadd.s32 %s108, 1
    %p112 = scmp.eq.s32.totalorder %s11, 1
    %p113 = scmp.ne.s32.totalorder %s108, %s110
    %p114 = scmp.eq.s32.totalorder %s11, 0
    %p115 = por %p113, %p114
    %p116 = scmp.ne.s32.totalorder %s108, %s110
    %p117 = scmp.eq.s32.totalorder %s16, 1
    %p118 = por %p116, %p117
    %p119 = scmp.ne.s32.totalorder %s110, %s111
    %p120 = scmp.eq.s32.totalorder %s16, 0
    %p121 = por %p119, %p120
    %p122 = scmp.ne.s32.totalorder %s110, %s111
    %p123 = scmp.eq.s32.totalorder %s17, 1
    %p124 = por %p122, %p123
    %p126 = scmp.ne.s32.totalorder %s111, %s125
    %p127 = scmp.eq.s32.totalorder %s17, 0
    %p128 = por %p126, %p127
    %s129 = ssub.s32 %s11, %s18
    %p130 = scmp.eq.s32.totalorder %s129, 0
    %s132 = sadd.s32 %s131, 1
    %s133 = scalar_select %p130, %s131, %s132
    %p136 = pneg %p130
    %p137 = scmp.eq.s32.totalorder %s11, 1
    %p138 = por %p136, %p137
    %p139 = scmp.ne.s32.totalorder %s131, %s134
    %p140 = scmp.eq.s32.totalorder %s11, 0
    %p141 = por %p139, %p140
    %p142 = scmp.ne.s32.totalorder %s131, %s134
    %p143 = scmp.eq.s32.totalorder %s16, 1
    %p144 = por %p142, %p143
    %p145 = scmp.ne.s32.totalorder %s134, %s135
    %p146 = scmp.eq.s32.totalorder %s16, 0
    %p147 = por %p145, %p146
    %p148 = scmp.ne.s32.totalorder %s134, %s135
    %p149 = scmp.eq.s32.totalorder %s17, 1
    %p150 = por %p148, %p149
    %p152 = scmp.ne.s32.totalorder %s135, %s151
    %p153 = scmp.eq.s32.totalorder %s17, 0
    %p154 = por %p152, %p153
    %p155 = scmp.le.s32.totalorder 1, %s11
    %p156 = scmp.lt.s32.totalorder %s11, 3
    %p157 = pnand %p155, %p156
    %p158 = pneg %p157
    // Predicated region
    $region9: #{terrain_consistent_loss.1} parent=5 // pred_check
      _
    $region10: #{terrain_consistent_loss.1} parent=5 // pred_check_branch
      %160 = sbr.rel (%p157) target = $region12
    $region11: #{terrain_consistent_loss.1} parent=5 // pred_region
      %s161 = ssub.s32 %s11, 1
      // Predicated region
      $region13: #{terrain_consistent_loss.1} parent=11 // pred_check
        %p162 = pneg %p58
      $region14: #{terrain_consistent_loss.1} parent=11 // pred_check_branch
        %164 = sbr.rel (%p162) target = $region16
      $region15: #{terrain_consistent_loss.1} parent=11 // pred_region
        _
      $region16: #{terrain_consistent_loss.1} parent=11 // pred_fallthru
        _
      // Predicated region
      $region17: #{terrain_consistent_loss.1} parent=11 // pred_check
        %p165 = pneg %p79
      $region18: #{terrain_consistent_loss.1} parent=11 // pred_check_branch
        %167 = sbr.rel (%p165) target = $region20
      $region19: #{terrain_consistent_loss.1} parent=11 // pred_region
        _
      $region20: #{terrain_consistent_loss.1} parent=11 // pred_fallthru
        _
      // Predicated region
      $region21: #{terrain_consistent_loss.1} parent=11 // pred_check
        %p168 = pneg %p100
      $region22: #{terrain_consistent_loss.1} parent=11 // pred_check_branch
        %170 = sbr.rel (%p168) target = $region24
      $region23: #{terrain_consistent_loss.1} parent=11 // pred_region
        _
      $region24: #{terrain_consistent_loss.1} parent=11 // pred_fallthru
        _
      // Predicated region
      $region25: #{terrain_consistent_loss.1} parent=11 // pred_check
        %p171 = pneg %p121
      $region26: #{terrain_consistent_loss.1} parent=11 // pred_check_branch
        %173 = sbr.rel (%p171) target = $region28
      $region27: #{terrain_consistent_loss.1} parent=11 // pred_region
        _
      $region28: #{terrain_consistent_loss.1} parent=11 // pred_fallthru
        _
    $region12: #{terrain_consistent_loss.1} parent=5 // pred_fallthru
      _
    %p174 = scmp.lt.s32.totalorder %s11, 2
    // Predicated region
    $region29: #{terrain_consistent_loss.1} parent=5 // pred_check
      %p175 = pneg %p174
    $region30: #{terrain_consistent_loss.1} parent=5 // pred_check_branch
      %177 = sbr.rel (%p175) target = $region32
    $region31: #{terrain_consistent_loss.1} parent=5 // pred_region
      // Predicated region
      $region33: #{terrain_consistent_loss.1} parent=31 // pred_check
        %p178 = pneg %p31
      $region34: #{terrain_consistent_loss.1} parent=31 // pred_check_branch
        %180 = sbr.rel (%p178) target = $region36
      $region35: #{terrain_consistent_loss.1} parent=31 // pred_region
        %p181 = scmp.lt.s32.totalorder %s11, 1
        %s182 = scalar_select %p181, %s11, 1
        %s183 = smul.addr %s182, 8
        %s184 = smul.addr %s183, 8
        %s185 = scalar_lea.vmem %s0, %s184
      $region36: #{terrain_consistent_loss.1} parent=31 // pred_fallthru
        _
    $region32: #{terrain_consistent_loss.1} parent=5 // pred_fallthru
      _
    %p186 = scmp.le.s32.totalorder 1, %s11
    %p187 = scmp.lt.s32.totalorder %s11, 3
    %p188 = pnand %p186, %p187
    %p189 = pneg %p188
    // Predicated region
    $region37: #{terrain_consistent_loss.1} parent=5 // pred_check
      _
    $region38: #{terrain_consistent_loss.1} parent=5 // pred_check_branch
      %191 = sbr.rel (%p188) target = $region40
    $region39: #{terrain_consistent_loss.1} parent=5 // pred_region
      %s192 = ssub.s32 %s11, 1
      %p193 = scmp.lt.s32.totalorder %s16, 1
      %s194 = scalar_select %p193, %s16, 1
      %s195 = smul.addr %s194, 8
      %s196 = smul.addr %s195, 8
      %s197 = scalar_lea.vmem %s0, %s196
      %p198 = pneg %p37
      %p199 = pneg %p34
      %p200 = pneg %p58
      %p201 = pneg %p55
      %p202 = pneg %p79
      %p203 = pneg %p76
      %p204 = pneg %p100
      %p205 = pneg %p97
      %p206 = pneg %p121
      %p207 = pneg %p118
      %p208 = pneg %p147
      %p209 = pneg %p144
      %p210 = scmp.lt.s32.totalorder %s16, 1
      %s211 = scalar_select %p210, %s16, 1
      %s212 = smul.addr %s211, 8
      %s213 = scalar_lea.vmem %s5, %s212
      %p214 = scmp.lt.s32.totalorder %s16, 1
      %s215 = scalar_select %p214, %s16, 1
      %s216 = smul.addr %s215, 8
      %s217 = smul.addr %s216, 8
      %s218 = scalar_lea.vmem %s0, %s217
      %p219 = scmp.lt.s32.totalorder %s16, 1
      %s220 = scalar_select %p219, %s16, 1
      %s221 = smul.addr %s220, 8
      %s222 = scalar_lea.vmem %s5, %s221
      %v224 = vld [vmem:[%s218 + $0x7] sm:$0xff]
      %v225 = vld [vmem:[%s218 + $0xf] sm:$0xff]
      %v226 = vld [vmem:[%s218 + $0x17] sm:$0xff]
      %v227 = vld [vmem:[%s218 + $0x1f] sm:$0xff]
      %v228 = vld [vmem:[%s218 + $0x27] sm:$0xff]
      %v229 = vld [vmem:[%s218 + $0x2f] sm:$0xff]
      %v230 = vpack.c.bf16 %v225, %v224
      %v231 = vpack.c.bf16 %v227, %v226
      %v232 = vpack.c.bf16 %v229, %v228
      %v233 = vld [vmem:[%s1] sm:$0xf]
      %v234 = vld [vmem:[%s1 + $0x4] sm:$0xf]
      %v235 = vld [vmem:[%s1 + $0x8] sm:$0xf]
      %v236 = vld [vmem:[%s1 + $0xc] sm:$0xf]
      %v237 = vld [vmem:[%s1 + $0x10] sm:$0xf]
      %v238 = vld [vmem:[%s1 + $0x14] sm:$0xf]
      %v239 = vld [vmem:[%s1 + $0x18] sm:$0xf]
      %v240 = vld [vmem:[%s1 + $0x1c] sm:$0xf]
      %v241 = vld [vmem:[%s1 + $0x20] sm:$0xf]
      %v242 = vld [vmem:[%s1 + $0x24] sm:$0xf]
      %v243 = vld [vmem:[%s1 + $0x28] sm:$0xf]
      %v244 = vld [vmem:[%s1 + $0x2c] sm:$0xf]
      %v245 = vld [vmem:[%s1 + $0x30] sm:$0xf]
      %v246 = vld [vmem:[%s1 + $0x34] sm:$0xf]
      %v247 = vld [vmem:[%s1 + $0x38] sm:$0xf]
      %v248 = vld [vmem:[%s1 + $0x3c] sm:$0xf]
      %v249 = vld [vmem:[%s218 + $0x8] sm:$0xff]
      %v250 = vld [vmem:[%s218 + $0x10] sm:$0xff]
      %v251 = vld [vmem:[%s218 + $0x18] sm:$0xff]
      %v252 = vld [vmem:[%s218 + $0x20] sm:$0xff]
      %v253 = vld [vmem:[%s218 + $0x28] sm:$0xff]
      %v254 = vld [vmem:[%s218 + $0x30] sm:$0xff]
      %v255 = vpack.c.bf16 %v250, %v249
      %v256 = vpack.c.bf16 %v252, %v251
      %v257 = vpack.c.bf16 %v254, %v253
      %s258 = scalar_lea.vmem %s1, 64
      %v259 = vld [vmem:[%s258] sm:$0xf]
      %v260 = vld [vmem:[%s258 + $0x4] sm:$0xf]
      %v261 = vld [vmem:[%s258 + $0x8] sm:$0xf]
      %v262 = vld [vmem:[%s258 + $0xc] sm:$0xf]
      %v263 = vld [vmem:[%s258 + $0x10] sm:$0xf]
      %v264 = vld [vmem:[%s258 + $0x14] sm:$0xf]
      %v265 = vld [vmem:[%s258 + $0x18] sm:$0xf]
      %v266 = vld [vmem:[%s258 + $0x1c] sm:$0xf]
      %v267 = vld [vmem:[%s258 + $0x20] sm:$0xf]
      %v268 = vld [vmem:[%s258 + $0x24] sm:$0xf]
      %v269 = vld [vmem:[%s258 + $0x28] sm:$0xf]
      %v270 = vld [vmem:[%s258 + $0x2c] sm:$0xf]
      %v271 = vld [vmem:[%s258 + $0x30] sm:$0xf]
      %v272 = vld [vmem:[%s258 + $0x34] sm:$0xf]
      %v273 = vld [vmem:[%s258 + $0x38] sm:$0xf]
      %v274 = vld [vmem:[%s258 + $0x3c] sm:$0xf]
      %v291 = vunpack.c.l.b16 %v259
      %v292 = vunpack.c.l.b16 %v260
      %v293 = vunpack.c.l.b16 %v261
      %v294 = vunpack.c.l.b16 %v262
      %v295 = vunpack.c.l.b16 %v263
      %v296 = vunpack.c.l.b16 %v264
      %v297 = vunpack.c.l.b16 %v265
      %v298 = vunpack.c.l.b16 %v266
      %v299 = vunpack.c.l.b16 %v267
      %v300 = vunpack.c.l.b16 %v268
      %v301 = vunpack.c.l.b16 %v269
      %v302 = vunpack.c.l.b16 %v270
      %v303 = vunpack.c.l.b16 %v271
      %v304 = vunpack.c.l.b16 %v272
      %v305 = vunpack.c.l.b16 %v273
      %v306 = vunpack.c.l.b16 %v274
      %v307 = vpack.c.b16 %v292, %v291
      %v308 = vpack.c.b16 %v294, %v293
      %v309 = vpack.c.b16 %v296, %v295
      %v310 = vpack.c.b16 %v298, %v297
      %v311 = vpack.c.b16 %v300, %v299
      %v312 = vpack.c.b16 %v302, %v301
      %v313 = vpack.c.b16 %v304, %v303
      %v314 = vpack.c.b16 %v306, %v305
      %323 = vmatprep.subr.bf16.mxu0 0
      %324 = vmatpush1.bf16.msra.mxu0 %v307
      %325 = vmatprep.subr.bf16.mxu0 0
      %326 = vmatpush1.bf16.msra.mxu0 %v308
      %327 = vmatprep.subr.bf16.mxu0 0
      %328 = vmatpush1.bf16.msra.mxu0 %v309
      %329 = vmatprep.subr.bf16.mxu0 0
      %330 = vmatpush1.bf16.msra.mxu0 %v310
      %331 = vmatprep.subr.bf16.mxu0 0
      %332 = vmatpush1.bf16.msra.mxu0 %v311
      %333 = vmatprep.subr.bf16.mxu0 0
      %334 = vmatpush1.bf16.msra.mxu0 %v312
      %335 = vmatprep.subr.bf16.mxu0 0
      %336 = vmatpush1.bf16.msra.mxu0 %v313
      %337 = vmatprep.subr.bf16.mxu0 0
      %338 = vmatpush1.bf16.msra.mxu0 %v314
      %339 = vmatprep.subr.bf16.mxu0 0
      %340 = vmatpush1.bf16.msra.mxu0 0
      %341 = vmatprep.subr.bf16.mxu0 0
      %342 = vmatpush1.bf16.msra.mxu0 0
      %343 = vmatprep.subr.bf16.mxu0 0
      %344 = vmatpush1.bf16.msra.mxu0 0
      %345 = vmatprep.subr.bf16.mxu0 0
      %346 = vmatpush1.bf16.msra.mxu0 0
      %347 = vmatprep.subr.bf16.mxu0 0
      %348 = vmatpush1.bf16.msra.mxu0 0
      %349 = vmatprep.subr.bf16.mxu0 0
      %350 = vmatpush1.bf16.msra.mxu0 0
      %351 = vmatprep.subr.bf16.mxu0 0
      %352 = vmatpush1.bf16.msra.mxu0 0
      %353 = vmatprep.subr.bf16.mxu0 0
      %354 = vmatpush1.bf16.msra.mxu0 0
      %355 = vmatprep.mubr.bf16.mxu0 0
      %356 = vmatmul.mubr.bf16.gmra.mrb[0].mxu0 %v255
      %v357 = vpop.f32.mrb[0].mxu0
      %v358 = vadd.f32 0.0, %v357
      %v359 = vpop.f32.mrb[0].mxu0
      %v360 = vpop.f32.mrb[0].mxu0
      %v361 = vadd.f32 0.0, %v360
      %v362 = vpop.f32.mrb[0].mxu0
      %363 = vmatprep.mubr.bf16.mxu0 0
      %364 = vmatmul.mubr.bf16.gmra.mrb[0].mxu0 %v256
      %v365 = vpop.f32.mrb[0].mxu0
      %v366 = vadd.f32 0.0, %v365
      %v367 = vpop.f32.mrb[0].mxu0
      %v368 = vpop.f32.mrb[0].mxu0
      %v369 = vadd.f32 0.0, %v368
      %v370 = vpop.f32.mrb[0].mxu0
      %371 = vmatprep.mubr.bf16.mxu0 0
      %372 = vmatmul.mubr.bf16.gmra.mrb[0].mxu0 %v257
      %v373 = vpop.f32.mrb[0].mxu0
      %v374 = vadd.f32 0.0, %v373
      %v375 = vpop.f32.mrb[0].mxu0
      %v376 = vpop.f32.mrb[0].mxu0
      %v377 = vadd.f32 0.0, %v376
      %v378 = vpop.f32.mrb[0].mxu0
      %379 = vdwg.mxu0
      %v396 = vunpack.c.l.b16 %v233
      %v397 = vunpack.c.l.b16 %v234
      %v398 = vunpack.c.l.b16 %v235
      %v399 = vunpack.c.l.b16 %v236
      %v400 = vunpack.c.l.b16 %v237
      %v401 = vunpack.c.l.b16 %v238
      %v402 = vunpack.c.l.b16 %v239
      %v403 = vunpack.c.l.b16 %v240
      %v404 = vunpack.c.l.b16 %v241
      %v405 = vunpack.c.l.b16 %v242
      %v406 = vunpack.c.l.b16 %v243
      %v407 = vunpack.c.l.b16 %v244
      %v408 = vunpack.c.l.b16 %v245
      %v409 = vunpack.c.l.b16 %v246
      %v410 = vunpack.c.l.b16 %v247
      %v411 = vunpack.c.l.b16 %v248
      %v412 = vpack.c.b16 %v397, %v396
      %v413 = vpack.c.b16 %v399, %v398
      %v414 = vpack.c.b16 %v401, %v400
      %v415 = vpack.c.b16 %v403, %v402
      %v416 = vpack.c.b16 %v405, %v404
      %v417 = vpack.c.b16 %v407, %v406
      %v418 = vpack.c.b16 %v409, %v408
      %v419 = vpack.c.b16 %v411, %v410
      %428 = vmatprep.subr.bf16.mxu0 0
      %429 = vmatpush1.bf16.msra.mxu0 %v412
      %430 = vmatprep.subr.bf16.mxu0 0
      %431 = vmatpush1.bf16.msra.mxu0 %v413
      %432 = vmatprep.subr.bf16.mxu0 0
      %433 = vmatpush1.bf16.msra.mxu0 %v414
      %434 = vmatprep.subr.bf16.mxu0 0
      %435 = vmatpush1.bf16.msra.mxu0 %v415
      %436 = vmatprep.subr.bf16.mxu0 0
      %437 = vmatpush1.bf16.msra.mxu0 %v416
      %438 = vmatprep.subr.bf16.mxu0 0
      %439 = vmatpush1.bf16.msra.mxu0 %v417
      %440 = vmatprep.subr.bf16.mxu0 0
      %441 = vmatpush1.bf16.msra.mxu0 %v418
      %442 = vmatprep.subr.bf16.mxu0 0
      %443 = vmatpush1.bf16.msra.mxu0 %v419
      %444 = vmatprep.subr.bf16.mxu0 0
      %445 = vmatpush1.bf16.msra.mxu0 0
      %446 = vmatprep.subr.bf16.mxu0 0
      %447 = vmatpush1.bf16.msra.mxu0 0
      %448 = vmatprep.subr.bf16.mxu0 0
      %449 = vmatpush1.bf16.msra.mxu0 0
      %450 = vmatprep.subr.bf16.mxu0 0
      %451 = vmatpush1.bf16.msra.mxu0 0
      %452 = vmatprep.subr.bf16.mxu0 0
      %453 = vmatpush1.bf16.msra.mxu0 0
      %454 = vmatprep.subr.bf16.mxu0 0
      %455 = vmatpush1.bf16.msra.mxu0 0
      %456 = vmatprep.subr.bf16.mxu0 0
      %457 = vmatpush1.bf16.msra.mxu0 0
      %458 = vmatprep.subr.bf16.mxu0 0
      %459 = vmatpush1.bf16.msra.mxu0 0
      %460 = vmatprep.mubr.bf16.mxu0 0
      %461 = vmatmul.mubr.bf16.gmra.mrb[0].mxu0 %v230
      %v462 = vpop.f32.mrb[0].mxu0
      %v463 = vadd.f32 %v358, %v462
      %v464 = vpop.f32.mrb[0].mxu0
      %v465 = vpop.f32.mrb[0].mxu0
      %v466 = vadd.f32 %v361, %v465
      %v467 = vpop.f32.mrb[0].mxu0
      %468 = vmatprep.mubr.bf16.mxu0 0
      %469 = vmatmul.mubr.bf16.gmra.mrb[0].mxu0 %v231
      %v470 = vpop.f32.mrb[0].mxu0
      %v471 = vadd.f32 %v366, %v470
      %v472 = vpop.f32.mrb[0].mxu0
      %v473 = vpop.f32.mrb[0].mxu0
      %v474 = vadd.f32 %v369, %v473
      %v475 = vpop.f32.mrb[0].mxu0
      %476 = vmatprep.mubr.bf16.mxu0 0
      %477 = vmatmul.mubr.bf16.gmra.mrb[0].mxu0 %v232
      %v478 = vpop.f32.mrb[0].mxu0
      %v479 = vadd.f32 %v374, %v478
      %v480 = vpop.f32.mrb[0].mxu0
      %v481 = vpop.f32.mrb[0].mxu0
      %v482 = vadd.f32 %v377, %v481
      %v483 = vpop.f32.mrb[0].mxu0
      %484 = vdwg.mxu0
      %v485 = vld [vmem:[%s218 + $0x9] sm:$0xff]
      %v486 = vld [vmem:[%s218 + $0x11] sm:$0xff]
      %v487 = vld [vmem:[%s218 + $0x19] sm:$0xff]
      %v488 = vld [vmem:[%s218 + $0x21] sm:$0xff]
      %v489 = vld [vmem:[%s218 + $0x29] sm:$0xff]
      %v490 = vld [vmem:[%s218 + $0x31] sm:$0xff]
      %v491 = vpack.c.bf16 %v486, %v485
      %v492 = vpack.c.bf16 %v488, %v487
      %v493 = vpack.c.bf16 %v490, %v489
      %s494 = scalar_lea.vmem %s1, 128
      %v495 = vld [vmem:[%s494] sm:$0xf]
      %v496 = vld [vmem:[%s494 + $0x4] sm:$0xf]
      %v497 = vld [vmem:[%s494 + $0x8] sm:$0xf]
      %v498 = vld [vmem:[%s494 + $0xc] sm:$0xf]
      %v499 = vld [vmem:[%s494 + $0x10] sm:$0xf]
      %v500 = vld [vmem:[%s494 + $0x14] sm:$0xf]
      %v501 = vld [vmem:[%s494 + $0x18] sm:$0xf]
      %v502 = vld [vmem:[%s494 + $0x1c] sm:$0xf]
      %v503 = vld [vmem:[%s494 + $0x20] sm:$0xf]
      %v504 = vld [vmem:[%s494 + $0x24] sm:$0xf]
      %v505 = vld [vmem:[%s494 + $0x28] sm:$0xf]
      %v506 = vld [vmem:[%s494 + $0x2c] sm:$0xf]
      %v507 = vld [vmem:[%s494 + $0x30] sm:$0xf]
      %v508 = vld [vmem:[%s494 + $0x34] sm:$0xf]
      %v509 = vld [vmem:[%s494 + $0x38] sm:$0xf]
      %v510 = vld [vmem:[%s494 + $0x3c] sm:$0xf]
      %v527 = vunpack.c.l.b16 %v495
      %v528 = vunpack.c.l.b16 %v496
      %v529 = vunpack.c.l.b16 %v497
      %v530 = vunpack.c.l.b16 %v498
      %v531 = vunpack.c.l.b16 %v499
      %v532 = vunpack.c.l.b16 %v500
      %v533 = vunpack.c.l.b16 %v501
      %v534 = vunpack.c.l.b16 %v502
      %v535 = vunpack.c.l.b16 %v503
      %v536 = vunpack.c.l.b16 %v504
      %v537 = vunpack.c.l.b16 %v505
      %v538 = vunpack.c.l.b16 %v506
      %v539 = vunpack.c.l.b16 %v507
      %v540 = vunpack.c.l.b16 %v508
      %v541 = vunpack.c.l.b16 %v509
      %v542 = vunpack.c.l.b16 %v510
      %v543 = vpack.c.b16 %v528, %v527
      %v544 = vpack.c.b16 %v530, %v529
      %v545 = vpack.c.b16 %v532, %v531
      %v546 = vpack.c.b16 %v534, %v533
      %v547 = vpack.c.b16 %v536, %v535
      %v548 = vpack.c.b16 %v538, %v537
      %v549 = vpack.c.b16 %v540, %v539
      %v550 = vpack.c.b16 %v542, %v541
      %559 = vmatprep.subr.bf16.mxu0 0
      %560 = vmatpush1.bf16.msra.mxu0 %v543
      %561 = vmatprep.subr.bf16.mxu0 0
      %562 = vmatpush1.bf16.msra.mxu0 %v544
      %563 = vmatprep.subr.bf16.mxu0 0
      %564 = vmatpush1.bf16.msra.mxu0 %v545
      %565 = vmatprep.subr.bf16.mxu0 0
      %566 = vmatpush1.bf16.msra.mxu0 %v546
      %567 = vmatprep.subr.bf16.mxu0 0
      %568 = vmatpush1.bf16.msra.mxu0 %v547
      %569 = vmatprep.subr.bf16.mxu0 0
      %570 = vmatpush1.bf16.msra.mxu0 %v548
      %571 = vmatprep.subr.bf16.mxu0 0
      %572 = vmatpush1.bf16.msra.mxu0 %v549
      %573 = vmatprep.subr.bf16.mxu0 0
      %574 = vmatpush1.bf16.msra.mxu0 %v550
      %575 = vmatprep.subr.bf16.mxu0 0
      %576 = vmatpush1.bf16.msra.mxu0 0
      %577 = vmatprep.subr.bf16.mxu0 0
      %578 = vmatpush1.bf16.msra.mxu0 0
      %579 = vmatprep.subr.bf16.mxu0 0
      %580 = vmatpush1.bf16.msra.mxu0 0
      %581 = vmatprep.subr.bf16.mxu0 0
      %582 = vmatpush1.bf16.msra.mxu0 0
      %583 = vmatprep.subr.bf16.mxu0 0
      %584 = vmatpush1.bf16.msra.mxu0 0
      %585 = vmatprep.subr.bf16.mxu0 0
      %586 = vmatpush1.bf16.msra.mxu0 0
      %587 = vmatprep.subr.bf16.mxu0 0
      %588 = vmatpush1.bf16.msra.mxu0 0
      %589 = vmatprep.subr.bf16.mxu0 0
      %590 = vmatpush1.bf16.msra.mxu0 0
      %591 = vmatprep.mubr.bf16.mxu0 0
      %592 = vmatmul.mubr.bf16.gmra.mrb[0].mxu0 %v491
      %v593 = vpop.f32.mrb[0].mxu0
      %v594 = vadd.f32 0.0, %v593
      %v595 = vpop.f32.mrb[0].mxu0
      %v596 = vpop.f32.mrb[0].mxu0
      %v597 = vadd.f32 0.0, %v596
      %v598 = vpop.f32.mrb[0].mxu0
      %599 = vmatprep.mubr.bf16.mxu0 0
      %600 = vmatmul.mubr.bf16.gmra.mrb[0].mxu0 %v492
      %v601 = vpop.f32.mrb[0].mxu0
      %v602 = vadd.f32 0.0, %v601
      %v603 = vpop.f32.mrb[0].mxu0
      %v604 = vpop.f32.mrb[0].mxu0
      %v605 = vadd.f32 0.0, %v604
      %v606 = vpop.f32.mrb[0].mxu0
      %607 = vmatprep.mubr.bf16.mxu0 0
      %608 = vmatmul.mubr.bf16.gmra.mrb[0].mxu0 %v493
      %v609 = vpop.f32.mrb[0].mxu0
      %v610 = vadd.f32 0.0, %v609
      %v611 = vpop.f32.mrb[0].mxu0
      %v612 = vpop.f32.mrb[0].mxu0
      %v613 = vadd.f32 0.0, %v612
      %v614 = vpop.f32.mrb[0].mxu0
      %615 = vdwg.mxu0
      %v616 = vadd.f32 %v463, %v594
      %v617 = vadd.f32 %v466, %v597
      %v618 = vadd.f32 %v471, %v602
      %v619 = vadd.f32 %v474, %v605
      %v620 = vadd.f32 %v479, %v610
      %v621 = vadd.f32 %v482, %v613
      %v622 = vld [vmem:[%s2] sm:$0x1]
      %v624 = vlaneseq
      %v625 = vshrl.u32 %v624, 7
      %v626 = vsub.s32 0, %v625
      %v627 = vrot.slane %v622, %v626
      %v629 = vadd.f32 %v616, %v627
      %v630 = vadd.f32 %v617, %v627
      %v631 = vadd.f32 %v618, %v627
      %v632 = vadd.f32 %v619, %v627
      %v633 = vadd.f32 %v620, %v627
      %v634 = vadd.f32 %v621, %v627
      %v635 = vmax.f32 %v629, 0.0
      %v636 = vmax.f32 %v630, 0.0
      %v637 = vmax.f32 %v631, 0.0
      %v638 = vmax.f32 %v632, 0.0
      %v639 = vmax.f32 %v633, 0.0
      %v640 = vmax.f32 %v634, 0.0
      %v641 = vlaneseq
      %v642 = vshrl.u32 %v641, 7
      %v643 = vadd.s32 %v642, 8
      %v644 = vadd.s32 %v642, 16
      %v645 = vadd.s32 %v642, 24
      %v646 = vadd.s32 %v642, 32
      %v647 = vadd.s32 %v642, 40
      %vm648 = vcmp.lt.s32.totalorder %v642, 0
      %v649 = vsub.s32 0, %v642
      %v650 = vsel %vm648, %v649, %v642
      %v651 = vmul.u32.u64.compose %v650, 2863311531
      %v652 = vextract.low.u32 %v651
      %v653 = vextract.high.u32 %v651
      %v654 = vshrl.u32 %v653, 4
      %v655 = vmul.u32 %v654, 24
      %v656 = vsub.s32 %v650, %v655
      %v657 = vsub.s32 0, %v656
      %v658 = vsel %vm648, %v657, %v656
      %vm659 = vcmp.lt.s32.totalorder %v643, 0
      %v660 = vsub.s32 0, %v643
      %v661 = vsel %vm659, %v660, %v643
      %v662 = vmul.u32.u64.compose %v661, 2863311531
      %v663 = vextract.low.u32 %v662
      %v664 = vextract.high.u32 %v662
      %v665 = vshrl.u32 %v664, 4
      %v666 = vmul.u32 %v665, 24
      %v667 = vsub.s32 %v661, %v666
      %v668 = vsub.s32 0, %v667
      %v669 = vsel %vm659, %v668, %v667
      %vm670 = vcmp.lt.s32.totalorder %v644, 0
      %v671 = vsub.s32 0, %v644
      %v672 = vsel %vm670, %v671, %v644
      %v673 = vmul.u32.u64.compose %v672, 2863311531
      %v674 = vextract.low.u32 %v673
      %v675 = vextract.high.u32 %v673
      %v676 = vshrl.u32 %v675, 4
      %v677 = vmul.u32 %v676, 24
      %v678 = vsub.s32 %v672, %v677
      %v679 = vsub.s32 0, %v678
      %v680 = vsel %vm670, %v679, %v678
      %vm681 = vcmp.lt.s32.totalorder %v645, 0
      %v682 = vsub.s32 0, %v645
      %v683 = vsel %vm681, %v682, %v645
      %v684 = vmul.u32.u64.compose %v683, 2863311531
      %v685 = vextract.low.u32 %v684
      %v686 = vextract.high.u32 %v684
      %v687 = vshrl.u32 %v686, 4
      %v688 = vmul.u32 %v687, 24
      %v689 = vsub.s32 %v683, %v688
      %v690 = vsub.s32 0, %v689
      %v691 = vsel %vm681, %v690, %v689
      %vm692 = vcmp.lt.s32.totalorder %v646, 0
      %v693 = vsub.s32 0, %v646
      %v694 = vsel %vm692, %v693, %v646
      %v695 = vmul.u32.u64.compose %v694, 2863311531
      %v696 = vextract.low.u32 %v695
      %v697 = vextract.high.u32 %v695
      %v698 = vshrl.u32 %v697, 4
      %v699 = vmul.u32 %v698, 24
      %v700 = vsub.s32 %v694, %v699
      %v701 = vsub.s32 0, %v700
      %v702 = vsel %vm692, %v701, %v700
      %vm703 = vcmp.lt.s32.totalorder %v647, 0
      %v704 = vsub.s32 0, %v647
      %v705 = vsel %vm703, %v704, %v647
      %v706 = vmul.u32.u64.compose %v705, 2863311531
      %v707 = vextract.low.u32 %v706
      %v708 = vextract.high.u32 %v706
      %v709 = vshrl.u32 %v708, 4
      %v710 = vmul.u32 %v709, 24
      %v711 = vsub.s32 %v705, %v710
      %v712 = vsub.s32 0, %v711
      %v713 = vsel %vm703, %v712, %v711
      %vm714 = vcmp.ne.s32.totalorder %v658, 0
      %vm715 = vcmp.ne.s32.totalorder %v669, 0
      %vm716 = vcmp.ne.s32.totalorder %v680, 0
      %vm717 = vcmp.ne.s32.totalorder %v691, 0
      %vm718 = vcmp.ne.s32.totalorder %v702, 0
      %vm719 = vcmp.ne.s32.totalorder %v713, 0
      %vm720 = vcmp.lt.s32.totalorder %v658, 0
      %vm721 = vcmp.lt.s32.totalorder %v669, 0
      %vm722 = vcmp.lt.s32.totalorder %v680, 0
      %vm723 = vcmp.lt.s32.totalorder %v691, 0
      %vm724 = vcmp.lt.s32.totalorder %v702, 0
      %vm725 = vcmp.lt.s32.totalorder %v713, 0
      %vm726 = vmand %vm720, %vm714
      %vm727 = vmand %vm721, %vm715
      %vm728 = vmand %vm722, %vm716
      %vm729 = vmand %vm723, %vm717
      %vm730 = vmand %vm724, %vm718
      %vm731 = vmand %vm725, %vm719
      %v732 = vadd.s32 %v658, 24
      %v733 = vadd.s32 %v669, 24
      %v734 = vadd.s32 %v680, 24
      %v735 = vadd.s32 %v691, 24
      %v736 = vadd.s32 %v702, 24
      %v737 = vadd.s32 %v713, 24
      %v738 = vsel %vm726, %v732, %v658
      %v739 = vsel %vm727, %v733, %v669
      %v740 = vsel %vm728, %v734, %v680
      %v741 = vsel %vm729, %v735, %v691
      %v742 = vsel %vm730, %v736, %v702
      %v743 = vsel %vm731, %v737, %v713
      %vm744 = vcmp.ge.s32.totalorder %v738, 1
      %vm745 = vcmp.ge.s32.totalorder %v739, 1
      %vm746 = vcmp.ge.s32.totalorder %v740, 1
      %vm747 = vcmp.ge.s32.totalorder %v741, 1
      %vm748 = vcmp.ge.s32.totalorder %v742, 1
      %vm749 = vcmp.ge.s32.totalorder %v743, 1
      %vm750 = vcmp.le.s32.totalorder %v738, 16
      %vm751 = vcmp.le.s32.totalorder %v739, 16
      %vm752 = vcmp.le.s32.totalorder %v740, 16
      %vm753 = vcmp.le.s32.totalorder %v741, 16
      %vm754 = vcmp.le.s32.totalorder %v742, 16
      %vm755 = vcmp.le.s32.totalorder %v743, 16
      %vm756 = vmand %vm744, %vm750
      %vm757 = vmand %vm745, %vm751
      %vm758 = vmand %vm746, %vm752
      %vm759 = vmand %vm747, %vm753
      %vm760 = vmand %vm748, %vm754
      %vm761 = vmand %vm749, %vm755
      %v762 = vsel %vm756, %v635, 0.0
      %v763 = vsel %vm757, %v636, 0.0
      %v764 = vsel %vm758, %v637, 0.0
      %v765 = vsel %vm759, %v638, 0.0
      %v766 = vsel %vm760, %v639, 0.0
      %v767 = vsel %vm761, %v640, 0.0
      %768 = vst [vmem:[#allocation2] sm:$0xff] 0.0
      %769 = vst [vmem:[#allocation2 + $0x38] sm:$0xff] 0.0
      %770 = vst [vmem:[#allocation2 + $0x8] sm:$0xff] %v762
      %771 = vst [vmem:[#allocation2 + $0x10] sm:$0xff] %v763
      %772 = vst [vmem:[#allocation2 + $0x18] sm:$0xff] %v764
      %773 = vst [vmem:[#allocation2 + $0x20] sm:$0xff] %v765
      %774 = vst [vmem:[#allocation2 + $0x28] sm:$0xff] %v766
      %775 = vst [vmem:[#allocation2 + $0x30] sm:$0xff] %v767
      %v776 = vld [vmem:[#allocation2 + $0x7] sm:$0xff]
      %v777 = vld [vmem:[#allocation2 + $0xf] sm:$0xff]
      %v778 = vld [vmem:[#allocation2 + $0x17] sm:$0xff]
      %v779 = vld [vmem:[#allocation2 + $0x1f] sm:$0xff]
      %v780 = vld [vmem:[#allocation2 + $0x27] sm:$0xff]
      %v781 = vld [vmem:[#allocation2 + $0x2f] sm:$0xff]
      %v782 = vpack.c.bf16 %v777, %v776
      %v783 = vpack.c.bf16 %v779, %v778
      %v784 = vpack.c.bf16 %v781, %v780
      %v785 = vld [vmem:[%s3] sm:$0xf]
      %v786 = vld [vmem:[%s3 + $0x4] sm:$0xf]
      %v787 = vld [vmem:[%s3 + $0x8] sm:$0xf]
      %v788 = vld [vmem:[%s3 + $0xc] sm:$0xf]
      %v789 = vld [vmem:[%s3 + $0x10] sm:$0xf]
      %v790 = vld [vmem:[%s3 + $0x14] sm:$0xf]
      %v791 = vld [vmem:[%s3 + $0x18] sm:$0xf]
      %v792 = vld [vmem:[%s3 + $0x1c] sm:$0xf]
      %v793 = vld [vmem:[%s3 + $0x20] sm:$0xf]
      %v794 = vld [vmem:[%s3 + $0x24] sm:$0xf]
      %v795 = vld [vmem:[%s3 + $0x28] sm:$0xf]
      %v796 = vld [vmem:[%s3 + $0x2c] sm:$0xf]
      %v797 = vld [vmem:[%s3 + $0x30] sm:$0xf]
      %v798 = vld [vmem:[%s3 + $0x34] sm:$0xf]
      %v799 = vld [vmem:[%s3 + $0x38] sm:$0xf]
      %v800 = vld [vmem:[%s3 + $0x3c] sm:$0xf]
      %v801 = vld [vmem:[#allocation2 + $0x8] sm:$0xff]
      %v802 = vld [vmem:[#allocation2 + $0x10] sm:$0xff]
      %v803 = vld [vmem:[#allocation2 + $0x18] sm:$0xff]
      %v804 = vld [vmem:[#allocation2 + $0x20] sm:$0xff]
      %v805 = vld [vmem:[#allocation2 + $0x28] sm:$0xff]
      %v806 = vld [vmem:[#allocation2 + $0x30] sm:$0xff]
      %v807 = vpack.c.bf16 %v802, %v801
      %v808 = vpack.c.bf16 %v804, %v803
      %v809 = vpack.c.bf16 %v806, %v805
      %s810 = scalar_lea.vmem %s3, 64
      %v811 = vld [vmem:[%s810] sm:$0xf]
      %v812 = vld [vmem:[%s810 + $0x4] sm:$0xf]
      %v813 = vld [vmem:[%s810 + $0x8] sm:$0xf]
      %v814 = vld [vmem:[%s810 + $0xc] sm:$0xf]
      %v815 = vld [vmem:[%s810 + $0x10] sm:$0xf]
      %v816 = vld [vmem:[%s810 + $0x14] sm:$0xf]
      %v817 = vld [vmem:[%s810 + $0x18] sm:$0xf]
      %v818 = vld [vmem:[%s810 + $0x1c] sm:$0xf]
      %v819 = vld [vmem:[%s810 + $0x20] sm:$0xf]
      %v820 = vld [vmem:[%s810 + $0x24] sm:$0xf]
      %v821 = vld [vmem:[%s810 + $0x28] sm:$0xf]
      %v822 = vld [vmem:[%s810 + $0x2c] sm:$0xf]
      %v823 = vld [vmem:[%s810 + $0x30] sm:$0xf]
      %v824 = vld [vmem:[%s810 + $0x34] sm:$0xf]
      %v825 = vld [vmem:[%s810 + $0x38] sm:$0xf]
      %v826 = vld [vmem:[%s810 + $0x3c] sm:$0xf]
      %v843 = vunpack.c.l.b16 %v811
      %v844 = vunpack.c.l.b16 %v812
      %v845 = vunpack.c.l.b16 %v813
      %v846 = vunpack.c.l.b16 %v814
      %v847 = vunpack.c.l.b16 %v815
      %v848 = vunpack.c.l.b16 %v816
      %v849 = vunpack.c.l.b16 %v817
      %v850 = vunpack.c.l.b16 %v818
      %v851 = vunpack.c.l.b16 %v819
      %v852 = vunpack.c.l.b16 %v820
      %v853 = vunpack.c.l.b16 %v821
      %v854 = vunpack.c.l.b16 %v822
      %v855 = vunpack.c.l.b16 %v823
      %v856 = vunpack.c.l.b16 %v824
      %v857 = vunpack.c.l.b16 %v825
      %v858 = vunpack.c.l.b16 %v826
      %v859 = vpack.c.b16 %v844, %v843
      %v860 = vpack.c.b16 %v846, %v845
      %v861 = vpack.c.b16 %v848, %v847
      %v862 = vpack.c.b16 %v850, %v849
      %v863 = vpack.c.b16 %v852, %v851
      %v864 = vpack.c.b16 %v854, %v853
      %v865 = vpack.c.b16 %v856, %v855
      %v866 = vpack.c.b16 %v858, %v857
      %875 = vmatprep.subr.bf16.mxu0 0
      %876 = vmatpush1.bf16.msra.mxu0 %v859
      %877 = vmatprep.subr.bf16.mxu0 0
      %878 = vmatpush1.bf16.msra.mxu0 %v860
      %879 = vmatprep.subr.bf16.mxu0 0
      %880 = vmatpush1.bf16.msra.mxu0 %v861
      %881 = vmatprep.subr.bf16.mxu0 0
      %882 = vmatpush1.bf16.msra.mxu0 %v862
      %883 = vmatprep.subr.bf16.mxu0 0
      %884 = vmatpush1.bf16.msra.mxu0 %v863
      %885 = vmatprep.subr.bf16.mxu0 0
      %886 = vmatpush1.bf16.msra.mxu0 %v864
      %887 = vmatprep.subr.bf16.mxu0 0
      %888 = vmatpush1.bf16.msra.mxu0 %v865
      %889 = vmatprep.subr.bf16.mxu0 0
      %890 = vmatpush1.bf16.msra.mxu0 %v866
      %891 = vmatprep.subr.bf16.mxu0 0
      %892 = vmatpush1.bf16.msra.mxu0 0
      %893 = vmatprep.subr.bf16.mxu0 0
      %894 = vmatpush1.bf16.msra.mxu0 0
      %895 = vmatprep.subr.bf16.mxu0 0
      %896 = vmatpush1.bf16.msra.mxu0 0
      %897 = vmatprep.subr.bf16.mxu0 0
      %898 = vmatpush1.bf16.msra.mxu0 0
      %899 = vmatprep.subr.bf16.mxu0 0
      %900 = vmatpush1.bf16.msra.mxu0 0
      %901 = vmatprep.subr.bf16.mxu0 0
      %902 = vmatpush1.bf16.msra.mxu0 0
      %903 = vmatprep.subr.bf16.mxu0 0
      %904 = vmatpush1.bf16.msra.mxu0 0
      %905 = vmatprep.subr.bf16.mxu0 0
      %906 = vmatpush1.bf16.msra.mxu0 0
      %907 = vmatprep.mubr.bf16.mxu0 0
      %908 = vmatmul.mubr.bf16.gmra.mrb[0].mxu0 %v807
      %v909 = vpop.f32.mrb[0].mxu0
      %v910 = vadd.f32 0.0, %v909
      %v911 = vpop.f32.mrb[0].mxu0
      %v912 = vpop.f32.mrb[0].mxu0
      %v913 = vadd.f32 0.0, %v912
      %v914 = vpop.f32.mrb[0].mxu0
      %915 = vmatprep.mubr.bf16.mxu0 0
      %916 = vmatmul.mubr.bf16.gmra.mrb[0].mxu0 %v808
      %v917 = vpop.f32.mrb[0].mxu0
      %v918 = vadd.f32 0.0, %v917
      %v919 = vpop.f32.mrb[0].mxu0
      %v920 = vpop.f32.mrb[0].mxu0
      %v921 = vadd.f32 0.0, %v920
      %v922 = vpop.f32.mrb[0].mxu0
      %923 = vmatprep.mubr.bf16.mxu0 0
      %924 = vmatmul.mubr.bf16.gmra.mrb[0].mxu0 %v809
      %v925 = vpop.f32.mrb[0].mxu0
      %v926 = vadd.f32 0.0, %v925
      %v927 = vpop.f32.mrb[0].mxu0
      %v928 = vpop.f32.mrb[0].mxu0
      %v929 = vadd.f32 0.0, %v928
      %v930 = vpop.f32.mrb[0].mxu0
      %931 = vdwg.mxu0
      %v948 = vunpack.c.l.b16 %v785
      %v949 = vunpack.c.l.b16 %v786
      %v950 = vunpack.c.l.b16 %v787
      %v951 = vunpack.c.l.b16 %v788
      %v952 = vunpack.c.l.b16 %v789
      %v953 = vunpack.c.l.b16 %v790
      %v954 = vunpack.c.l.b16 %v791
      %v955 = vunpack.c.l.b16 %v792
      %v956 = vunpack.c.l.b16 %v793
      %v957 = vunpack.c.l.b16 %v794
      %v958 = vunpack.c.l.b16 %v795
      %v959 = vunpack.c.l.b16 %v796
      %v960 = vunpack.c.l.b16 %v797
      %v961 = vunpack.c.l.b16 %v798
      %v962 = vunpack.c.l.b16 %v799
      %v963 = vunpack.c.l.b16 %v800
      %v964 = vpack.c.b16 %v949, %v948
      %v965 = vpack.c.b16 %v951, %v950
      %v966 = vpack.c.b16 %v953, %v952
      %v967 = vpack.c.b16 %v955, %v954
      %v968 = vpack.c.b16 %v957, %v956
      %v969 = vpack.c.b16 %v959, %v958
      %v970 = vpack.c.b16 %v961, %v960
      %v971 = vpack.c.b16 %v963, %v962
      %980 = vmatprep.subr.bf16.mxu0 0
      %981 = vmatpush1.bf16.msra.mxu0 %v964
      %982 = vmatprep.subr.bf16.mxu0 0
      %983 = vmatpush1.bf16.msra.mxu0 %v965
      %984 = vmatprep.subr.bf16.mxu0 0
      %985 = vmatpush1.bf16.msra.mxu0 %v966
      %986 = vmatprep.subr.bf16.mxu0 0
      %987 = vmatpush1.bf16.msra.mxu0 %v967
      %988 = vmatprep.subr.bf16.mxu0 0
      %989 = vmatpush1.bf16.msra.mxu0 %v968
      %990 = vmatprep.subr.bf16.mxu0 0
      %991 = vmatpush1.bf16.msra.mxu0 %v969
      %992 = vmatprep.subr.bf16.mxu0 0
      %993 = vmatpush1.bf16.msra.mxu0 %v970
      %994 = vmatprep.subr.bf16.mxu0 0
      %995 = vmatpush1.bf16.msra.mxu0 %v971
      %996 = vmatprep.subr.bf16.mxu0 0
      %997 = vmatpush1.bf16.msra.mxu0 0
      %998 = vmatprep.subr.bf16.mxu0 0
      %999 = vmatpush1.bf16.msra.mxu0 0
      %1000 = vmatprep.subr.bf16.mxu0 0
      %1001 = vmatpush1.bf16.msra.mxu0 0
      %1002 = vmatprep.subr.bf16.mxu0 0
      %1003 = vmatpush1.bf16.msra.mxu0 0
      %1004 = vmatprep.subr.bf16.mxu0 0
      %1005 = vmatpush1.bf16.msra.mxu0 0
      %1006 = vmatprep.subr.bf16.mxu0 0
      %1007 = vmatpush1.bf16.msra.mxu0 0
      %1008 = vmatprep.subr.bf16.mxu0 0
      %1009 = vmatpush1.bf16.msra.mxu0 0
      %1010 = vmatprep.subr.bf16.mxu0 0
      %1011 = vmatpush1.bf16.msra.mxu0 0
      %1012 = vmatprep.mubr.bf16.mxu0 0
      %1013 = vmatmul.mubr.bf16.gmra.mrb[0].mxu0 %v782
      %v1014 = vpop.f32.mrb[0].mxu0
      %v1015 = vadd.f32 %v910, %v1014
      %v1016 = vpop.f32.mrb[0].mxu0
      %v1017 = vpop.f32.mrb[0].mxu0
      %v1018 = vadd.f32 %v913, %v1017
      %v1019 = vpop.f32.mrb[0].mxu0
      %1020 = vmatprep.mubr.bf16.mxu0 0
      %1021 = vmatmul.mubr.bf16.gmra.mrb[0].mxu0 %v783
      %v1022 = vpop.f32.mrb[0].mxu0
      %v1023 = vadd.f32 %v918, %v1022
      %v1024 = vpop.f32.mrb[0].mxu0
      %v1025 = vpop.f32.mrb[0].mxu0
      %v1026 = vadd.f32 %v921, %v1025
      %v1027 = vpop.f32.mrb[0].mxu0
      %1028 = vmatprep.mubr.bf16.mxu0 0
      %1029 = vmatmul.mubr.bf16.gmra.mrb[0].mxu0 %v784
      %v1030 = vpop.f32.mrb[0].mxu0
      %v1031 = vadd.f32 %v926, %v1030
      %v1032 = vpop.f32.mrb[0].mxu0
      %v1033 = vpop.f32.mrb[0].mxu0
      %v1034 = vadd.f32 %v929, %v1033
      %v1035 = vpop.f32.mrb[0].mxu0
      %1036 = vdwg.mxu0
      %v1037 = vld [vmem:[#allocation2 + $0x9] sm:$0xff]
      %v1038 = vld [vmem:[#allocation2 + $0x11] sm:$0xff]
      %v1039 = vld [vmem:[#allocation2 + $0x19] sm:$0xff]
      %v1040 = vld [vmem:[#allocation2 + $0x21] sm:$0xff]
      %v1041 = vld [vmem:[#allocation2 + $0x29] sm:$0xff]
      %v1042 = vld [vmem:[#allocation2 + $0x31] sm:$0xff]
      %v1043 = vpack.c.bf16 %v1038, %v1037
      %v1044 = vpack.c.bf16 %v1040, %v1039
      %v1045 = vpack.c.bf16 %v1042, %v1041
      %s1046 = scalar_lea.vmem %s3, 128
      %v1047 = vld [vmem:[%s1046] sm:$0xf]
      %v1048 = vld [vmem:[%s1046 + $0x4] sm:$0xf]
      %v1049 = vld [vmem:[%s1046 + $0x8] sm:$0xf]
      %v1050 = vld [vmem:[%s1046 + $0xc] sm:$0xf]
      %v1051 = vld [vmem:[%s1046 + $0x10] sm:$0xf]
      %v1052 = vld [vmem:[%s1046 + $0x14] sm:$0xf]
      %v1053 = vld [vmem:[%s1046 + $0x18] sm:$0xf]
      %v1054 = vld [vmem:[%s1046 + $0x1c] sm:$0xf]
      %v1055 = vld [vmem:[%s1046 + $0x20] sm:$0xf]
      %v1056 = vld [vmem:[%s1046 + $0x24] sm:$0xf]
      %v1057 = vld [vmem:[%s1046 + $0x28] sm:$0xf]
      %v1058 = vld [vmem:[%s1046 + $0x2c] sm:$0xf]
      %v1059 = vld [vmem:[%s1046 + $0x30] sm:$0xf]
      %v1060 = vld [vmem:[%s1046 + $0x34] sm:$0xf]
      %v1061 = vld [vmem:[%s1046 + $0x38] sm:$0xf]
      %v1062 = vld [vmem:[%s1046 + $0x3c] sm:$0xf]
      %v1079 = vunpack.c.l.b16 %v1047
      %v1080 = vunpack.c.l.b16 %v1048
      %v1081 = vunpack.c.l.b16 %v1049
      %v1082 = vunpack.c.l.b16 %v1050
      %v1083 = vunpack.c.l.b16 %v1051
      %v1084 = vunpack.c.l.b16 %v1052
      %v1085 = vunpack.c.l.b16 %v1053
      %v1086 = vunpack.c.l.b16 %v1054
      %v1087 = vunpack.c.l.b16 %v1055
      %v1088 = vunpack.c.l.b16 %v1056
      %v1089 = vunpack.c.l.b16 %v1057
      %v1090 = vunpack.c.l.b16 %v1058
      %v1091 = vunpack.c.l.b16 %v1059
      %v1092 = vunpack.c.l.b16 %v1060
      %v1093 = vunpack.c.l.b16 %v1061
      %v1094 = vunpack.c.l.b16 %v1062
      %v1095 = vpack.c.b16 %v1080, %v1079
      %v1096 = vpack.c.b16 %v1082, %v1081
      %v1097 = vpack.c.b16 %v1084, %v1083
      %v1098 = vpack.c.b16 %v1086, %v1085
      %v1099 = vpack.c.b16 %v1088, %v1087
      %v1100 = vpack.c.b16 %v1090, %v1089
      %v1101 = vpack.c.b16 %v1092, %v1091
      %v1102 = vpack.c.b16 %v1094, %v1093
      %1111 = vmatprep.subr.bf16.mxu0 0
      %1112 = vmatpush1.bf16.msra.mxu0 %v1095
      %1113 = vmatprep.subr.bf16.mxu0 0
      %1114 = vmatpush1.bf16.msra.mxu0 %v1096
      %1115 = vmatprep.subr.bf16.mxu0 0
      %1116 = vmatpush1.bf16.msra.mxu0 %v1097
      %1117 = vmatprep.subr.bf16.mxu0 0
      %1118 = vmatpush1.bf16.msra.mxu0 %v1098
      %1119 = vmatprep.subr.bf16.mxu0 0
      %1120 = vmatpush1.bf16.msra.mxu0 %v1099
      %1121 = vmatprep.subr.bf16.mxu0 0
      %1122 = vmatpush1.bf16.msra.mxu0 %v1100
      %1123 = vmatprep.subr.bf16.mxu0 0
      %1124 = vmatpush1.bf16.msra.mxu0 %v1101
      %1125 = vmatprep.subr.bf16.mxu0 0
      %1126 = vmatpush1.bf16.msra.mxu0 %v1102
      %1127 = vmatprep.subr.bf16.mxu0 0
      %1128 = vmatpush1.bf16.msra.mxu0 0
      %1129 = vmatprep.subr.bf16.mxu0 0
      %1130 = vmatpush1.bf16.msra.mxu0 0
      %1131 = vmatprep.subr.bf16.mxu0 0
      %1132 = vmatpush1.bf16.msra.mxu0 0
      %1133 = vmatprep.subr.bf16.mxu0 0
      %1134 = vmatpush1.bf16.msra.mxu0 0
      %1135 = vmatprep.subr.bf16.mxu0 0
      %1136 = vmatpush1.bf16.msra.mxu0 0
      %1137 = vmatprep.subr.bf16.mxu0 0
      %1138 = vmatpush1.bf16.msra.mxu0 0
      %1139 = vmatprep.subr.bf16.mxu0 0
      %1140 = vmatpush1.bf16.msra.mxu0 0
      %1141 = vmatprep.subr.bf16.mxu0 0
      %1142 = vmatpush1.bf16.msra.mxu0 0
      %1143 = vmatprep.mubr.bf16.mxu0 0
      %1144 = vmatmul.mubr.bf16.gmra.mrb[0].mxu0 %v1043
      %v1145 = vpop.f32.mrb[0].mxu0
      %v1146 = vadd.f32 0.0, %v1145
      %v1147 = vpop.f32.mrb[0].mxu0
      %v1148 = vpop.f32.mrb[0].mxu0
      %v1149 = vadd.f32 0.0, %v1148
      %v1150 = vpop.f32.mrb[0].mxu0
      %1151 = vmatprep.mubr.bf16.mxu0 0
      %1152 = vmatmul.mubr.bf16.gmra.mrb[0].mxu0 %v1044
      %v1153 = vpop.f32.mrb[0].mxu0
      %v1154 = vadd.f32 0.0, %v1153
      %v1155 = vpop.f32.mrb[0].mxu0
      %v1156 = vpop.f32.mrb[0].mxu0
      %v1157 = vadd.f32 0.0, %v1156
      %v1158 = vpop.f32.mrb[0].mxu0
      %1159 = vmatprep.mubr.bf16.mxu0 0
      %1160 = vmatmul.mubr.bf16.gmra.mrb[0].mxu0 %v1045
      %v1161 = vpop.f32.mrb[0].mxu0
      %v1162 = vadd.f32 0.0, %v1161
      %v1163 = vpop.f32.mrb[0].mxu0
      %v1164 = vpop.f32.mrb[0].mxu0
      %v1165 = vadd.f32 0.0, %v1164
      %v1166 = vpop.f32.mrb[0].mxu0
      %1167 = vdwg.mxu0
      %v1168 = vadd.f32 %v1015, %v1146
      %v1169 = vadd.f32 %v1018, %v1149
      %v1170 = vadd.f32 %v1023, %v1154
      %v1171 = vadd.f32 %v1026, %v1157
      %v1172 = vadd.f32 %v1031, %v1162
      %v1173 = vadd.f32 %v1034, %v1165
      %v1174 = vld [vmem:[%s4] sm:$0x1]
      %v1176 = vlaneseq
      %v1177 = vshrl.u32 %v1176, 7
      %v1178 = vsub.s32 0, %v1177
      %v1179 = vrot.slane %v1174, %v1178
      %v1181 = vadd.f32 %v1168, %v1179
      %v1182 = vadd.f32 %v1169, %v1179
      %v1183 = vadd.f32 %v1170, %v1179
      %v1184 = vadd.f32 %v1171, %v1179
      %v1185 = vadd.f32 %v1172, %v1179
      %v1186 = vadd.f32 %v1173, %v1179
      %v1187 = vmax.f32 %v1181, 0.0
      %v1188 = vmax.f32 %v1182, 0.0
      %v1189 = vmax.f32 %v1183, 0.0
      %v1190 = vmax.f32 %v1184, 0.0
      %v1191 = vmax.f32 %v1185, 0.0
      %v1192 = vmax.f32 %v1186, 0.0
      %v1193 = vsel %vm756, %v1187, 0.0
      %v1194 = vsel %vm757, %v1188, 0.0
      %v1195 = vsel %vm758, %v1189, 0.0
      %v1196 = vsel %vm759, %v1190, 0.0
      %v1197 = vsel %vm760, %v1191, 0.0
      %v1198 = vsel %vm761, %v1192, 0.0
      %v1199 = vsub.f32 %v1193, %v1196
      %v1200 = vsub.f32 %v1194, %v1197
      %v1201 = vsub.f32 %v1195, %v1198
      %v1202 = vmul.f32 %v1199, %v1199
      %v1203 = vmul.f32 %v1200, %v1200
      %v1204 = vmul.f32 %v1201, %v1201
      %v1205 = vadd.f32 %v1202, %v1203
      %v1206 = vadd.f32 %v1205, %v1204
      %1207 = vst [vmem:[%s222] sm:$0xff] %v1206
      %p1208 = scmp.lt.s32.totalorder %s16, 1
      %s1209 = scalar_select %p1208, %s16, 1
      %s1210 = smul.addr %s1209, 8
      %s1211 = scalar_lea.vmem %s5, %s1210
      // Predicated region
      $region41: #{terrain_consistent_loss.1} parent=39 // pred_check
        %p1212 = pneg %p144
      $region42: #{terrain_consistent_loss.1} parent=39 // pred_check_branch
        %1214 = sbr.rel (%p1212) target = $region44
      $region43: #{terrain_consistent_loss.1} parent=39 // pred_region
        _
      $region44: #{terrain_consistent_loss.1} parent=39 // pred_fallthru
        _
    $region40: #{terrain_consistent_loss.1} parent=5 // pred_fallthru
      _
    %p1215 = scmp.le.s32.totalorder 2, %s11
    // Predicated region
    $region45: #{terrain_consistent_loss.1} parent=5 // pred_check
      %p1216 = pneg %p1215
    $region46: #{terrain_consistent_loss.1} parent=5 // pred_check_branch
      %1218 = sbr.rel (%p1216) target = $region48
    $region47: #{terrain_consistent_loss.1} parent=5 // pred_region
      %s1219 = ssub.s32 %s11, 2
      // Predicated region
      $region49: #{terrain_consistent_loss.1} parent=47 // pred_check
        %p1220 = pneg %p150
      $region50: #{terrain_consistent_loss.1} parent=47 // pred_check_branch
        %1222 = sbr.rel (%p1220) target = $region52
      $region51: #{terrain_consistent_loss.1} parent=47 // pred_region
        %p1223 = scmp.lt.s32.totalorder %s17, 1
        %s1224 = scalar_select %p1223, %s17, 1
        %s1225 = smul.addr %s1224, 8
        %s1226 = scalar_lea.vmem %s5, %s1225
      $region52: #{terrain_consistent_loss.1} parent=47 // pred_fallthru
        _
    $region48: #{terrain_consistent_loss.1} parent=5 // pred_fallthru
      _
  $region6: #{terrain_consistent_loss.1} parent=0 // loop_footer
    %s15 = sadd.s32 1, %s11
  $region7: #{terrain_consistent_loss.1} parent=0 // loop_footer_branch
    %10 = sbr.rel target = $region3
  $region8: #{terrain_consistent_loss.1} parent=0 // loop_exit
    _

</llo_original>
